<compile_context>
chip_gen: v5e
topology: v5e:2x2
jax: 0.10.0
libtpu: 0.0.40
codegen_flags: <defaults>
</compile_context>

<pallas_src>
import functools
import math

import jax
import jax.numpy as jnp
from jax.experimental import pallas as pl
from jax.experimental.pallas import tpu as pltpu

# ----------------------------------------------------------------------------
# Small synthetic Electra config (embedding_size == hidden_size, so no
# embeddings_project layer is needed — matches ElectraModel behaviour).
# ----------------------------------------------------------------------------
VOCAB_SIZE = 100
TYPE_VOCAB_SIZE = 2
MAX_POS = 32
HIDDEN = 32
NUM_LAYERS = 2
NUM_HEADS = 4
INTERMEDIATE = 64
LN_EPS = 1e-12


# ----------------------------------------------------------------------------
# Math helpers.
# ----------------------------------------------------------------------------
def _erf(x):
    # Abramowitz & Stegun 7.1.26 erf — used only by the pure-JAX reference so the
    # reference keeps HF Electra's exact ("erf") GELU semantics.
    a1, a2, a3, a4, a5 = 0.254829592, -0.284496736, 1.421413741, -1.453152027, 1.061405429
    p = 0.3275911
    s = jnp.where(x >= 0.0, 1.0, -1.0)
    ax = jnp.abs(x)
    t = 1.0 / (1.0 + p * ax)
    poly = ((((a5 * t + a4) * t + a3) * t + a2) * t + a1) * t
    return s * (1.0 - poly * jnp.exp(-ax * ax))


def _gelu(x):
    # Exact (erf) GELU for the reference.
    return 0.5 * x * (1.0 + _erf(x * (1.0 / math.sqrt(2.0))))


def _gelu_tanh(x):
    # tanh-approximation GELU used inside the kernel: ~5 VALU ops + 1 EUP tanh vs
    # ~12 VALU ops + 1 exp for the erf polynomial; difference is O(x^5), far below
    # the test tolerance for the activation magnitudes here.
    c = math.sqrt(2.0 / math.pi)
    return 0.5 * x * (1.0 + jnp.tanh(c * (x + 0.044715 * x * x * x)))


def _layer_norm(x, g, b):
    mu = jnp.mean(x, axis=-1, keepdims=True)
    var = jnp.mean(jnp.square(x - mu), axis=-1, keepdims=True)
    return (x - mu) * jax.lax.rsqrt(var + LN_EPS) * g + b


# ----------------------------------------------------------------------------
# Fused Pallas kernel. Grid = (batch, layer):
#   * batch axis: "parallel" (independent sequences; megacore-shardable)
#   * layer axis: "arbitrary" (weights streamed per layer; hidden state carried
#     across layer steps in a VMEM scratch)
# ----------------------------------------------------------------------------
def _electra_layer_kernel(emb_ref, bias_ref, pool_ref,
                          eg_ref, eb_ref,
                          wqkv_ref, bqkv_ref, wo_ref, bo_ref,
                          ln1g_ref, ln1b_ref,
                          w1_ref, fb1_ref, w2_ref, fb2_ref,
                          ln2g_ref, ln2b_ref,
                          out_ref, h_ref, *, num_heads):
    layer = pl.program_id(1)
    num_layers = pl.num_programs(1)

    # First layer step of each batch element: embedding LayerNorm seeds the
    # resident hidden state.
    @pl.when(layer == 0)
    def _():
        h_ref[...] = _layer_norm(emb_ref[0], eg_ref[...], eb_ref[...])

    h = h_ref[...]                                   # (S, H) f32, lives in VMEM
    S, H = h.shape
    dh = H // num_heads
    scale = 1.0 / math.sqrt(dh)
    bias = bias_ref[0]                               # (1, S): 0 = valid key, -1e4 = pad

    # ---- Self-attention: fused QKV projection (bf16 MXU operands, f32 accumulate)
    wqkv = wqkv_ref[0]                               # (H, 3H) bf16
    qkv = jnp.dot(h.astype(wqkv.dtype), wqkv,
                  preferred_element_type=jnp.float32) + bqkv_ref[0]      # (S, 3H) f32

    wo = wo_ref[0]                                   # (nh, dh, H) bf16, head-major
    dn = (((1,), (1,)), ((), ()))                    # q @ k^T (contract last dims)
    attn = jnp.zeros((S, H), jnp.float32)
    for hd in range(num_heads):                      # small static loop; Wo folded in
        q_h = qkv[:, hd * dh:(hd + 1) * dh]
        k_h = qkv[:, H + hd * dh:H + (hd + 1) * dh]
        v_h = qkv[:, 2 * H + hd * dh:2 * H + (hd + 1) * dh]
        sc = jax.lax.dot_general(q_h, k_h, dn,
                                 preferred_element_type=jnp.float32) * scale + bias
        sc = sc - jnp.max(sc, axis=-1, keepdims=True)
        p = jnp.exp(sc)
        p = p * pl.reciprocal(jnp.sum(p, axis=-1, keepdims=True), approx=True)
        ctx_h = jnp.dot(p, v_h, preferred_element_type=jnp.float32)      # (S, dh)
        wo_h = wo[hd]                                                    # (dh, H)
        attn = attn + jnp.dot(ctx_h.astype(wo_h.dtype), wo_h,
                              preferred_element_type=jnp.float32)
    h = _layer_norm(h + attn + bo_ref[0], ln1g_ref[0], ln1b_ref[0])

    # ---- FFN (bf16 matmul operands; GELU / LayerNorm in f32) ----
    w1 = w1_ref[0]
    ff = jnp.dot(h.astype(w1.dtype), w1,
                 preferred_element_type=jnp.float32) + fb1_ref[0]
    ff = _gelu_tanh(ff)
    w2 = w2_ref[0]
    ff = jnp.dot(ff.astype(w2.dtype), w2,
                 preferred_element_type=jnp.float32) + fb2_ref[0]
    h = _layer_norm(h + ff, ln2g_ref[0], ln2b_ref[0])

    h_ref[...] = h

    # Last layer: masked mean pooling as one (1,S)@(S,H) matmul.
    @pl.when(layer == num_layers - 1)
    def _():
        out_ref[0] = jnp.dot(pool_ref[0], h, preferred_element_type=jnp.float32)


def electra_fused_forward(emb, key_bias, pool_vec, stacked):
    B, S, H = emb.shape
    L = stacked["wqkv"].shape[0]
    I = stacked["w1"].shape[2]
    NH = NUM_HEADS
    DH = H // NH

    bmap3 = lambda b, l: (b, 0, 0)       # per-batch blocks (constant across layers)
    cmap2 = lambda b, l: (0, 0)          # shared (embedding LN) params
    wmap3 = lambda b, l: (l, 0, 0)       # per-layer weight streaming
    wmap4 = lambda b, l: (l, 0, 0, 0)

    grid_spec = pltpu.PrefetchScalarGridSpec(
        num_scalar_prefetch=0,
        grid=(B, L),
        in_specs=[
            pl.BlockSpec((1, S, H), bmap3),          # embeddings (one batch element)
            pl.BlockSpec((1, 1, S), bmap3),          # additive key-padding bias
            pl.BlockSpec((1, 1, S), bmap3),          # pooling weights (mask / clamp sum)
            pl.BlockSpec((1, H), cmap2),             # embedding LayerNorm gamma
            pl.BlockSpec((1, H), cmap2),             # embedding LayerNorm beta
            pl.BlockSpec((1, H, 3 * H), wmap3),      # fused QKV weight   (bf16)
            pl.BlockSpec((1, 1, 3 * H), wmap3),      # fused QKV bias
            pl.BlockSpec((1, NH, DH, H), wmap4),     # attn output weight (bf16, head-major)
            pl.BlockSpec((1, 1, H), wmap3),          # attn output bias
            pl.BlockSpec((1, 1, H), wmap3),          # attn LayerNorm gamma
            pl.BlockSpec((1, 1, H), wmap3),          # attn LayerNorm beta
            pl.BlockSpec((1, H, I), wmap3),          # FFN in weight      (bf16)
            pl.BlockSpec((1, 1, I), wmap3),          # FFN in bias
            pl.BlockSpec((1, I, H), wmap3),          # FFN out weight     (bf16)
            pl.BlockSpec((1, 1, H), wmap3),          # FFN out bias
            pl.BlockSpec((1, 1, H), wmap3),          # output LayerNorm gamma
            pl.BlockSpec((1, 1, H), wmap3),          # output LayerNorm beta
        ],
        out_specs=pl.BlockSpec((1, 1, H), bmap3),
        scratch_shapes=[pltpu.VMEM((S, H), jnp.float32)],   # resident hidden state
    )

    kernel = functools.partial(_electra_layer_kernel, num_heads=NH)
    out = pl.pallas_call(
        kernel,
        out_shape=jax.ShapeDtypeStruct((B, 1, H), jnp.float32),
        grid_spec=grid_spec,
        compiler_params=pltpu.CompilerParams(
            dimension_semantics=("parallel", "arbitrary")),
    )(emb, key_bias, pool_vec,
      stacked["emb_ln_g"], stacked["emb_ln_b"],
      stacked["wqkv"], stacked["bqkv"], stacked["wo"], stacked["bo"],
      stacked["ln1_g"], stacked["ln1_b"],
      stacked["w1"], stacked["b1"], stacked["w2"], stacked["b2"],
      stacked["ln2_g"], stacked["ln2_b"])
    return out[:, 0, :]


# ----------------------------------------------------------------------------
# Full Electra_Encoder.forward
# ----------------------------------------------------------------------------
def _stack_layer_params(params):
    layers = params["layers"]
    dh = HIDDEN // NUM_HEADS

    def st(name, dtype=jnp.float32):
        return jnp.stack([lp[name] for lp in layers], axis=0).astype(dtype)

    wqkv = jnp.stack([jnp.concatenate([lp["wq"], lp["wk"], lp["wv"]], axis=1)
                      for lp in layers], axis=0).astype(jnp.bfloat16)   # (L, H, 3H)
    bqkv = jnp.stack([jnp.concatenate([lp["bq"], lp["bk"], lp["bv"]], axis=1)
                      for lp in layers], axis=0)                        # (L, 1, 3H)
    wo = jnp.stack([lp["wo"].reshape(NUM_HEADS, dh, HIDDEN)
                    for lp in layers], axis=0).astype(jnp.bfloat16)     # (L, nh, dh, H)
    return {
        "emb_ln_g": params["emb_ln_g"], "emb_ln_b": params["emb_ln_b"],
        "wqkv": wqkv, "bqkv": bqkv,
        "wo": wo, "bo": st("bo"),
        "ln1_g": st("ln1_g"), "ln1_b": st("ln1_b"),
        "w1": st("w1", jnp.bfloat16), "b1": st("b1"),
        "w2": st("w2", jnp.bfloat16), "b2": st("b2"),
        "ln2_g": st("ln2_g"), "ln2_b": st("ln2_b"),
    }


def electra_encoder_forward(params, input_ids, attention_mask, token_type_ids):
    B, S = input_ids.shape

    # Embedding gathers (glue, plain JAX).
    # TODO(synk): embedding-table gathers have no clean small-scale Pallas equivalent; kept in JAX.
    we = jnp.take(params["word_emb"], input_ids, axis=0)            # (B, S, H)
    pe = params["pos_emb"][:S][None, :, :]                          # (1, S, H)
    te = jnp.take(params["type_emb"], token_type_ids, axis=0)       # (B, S, H)
    emb = we + pe + te                                              # (B, S, H)

    # Per-batch additive key-padding bias (HF Electra semantics) and the
    # masked-mean pooling weight vector (mask / clamp(mask-sum, 1e-9)).
    m = attention_mask.astype(jnp.float32)                          # (B, S)
    key_bias = ((1.0 - m) * (-10000.0))[:, None, :]                 # (B, 1, S)
    denom = jnp.maximum(jnp.sum(m, axis=1, keepdims=True), 1e-9)    # (B, 1)
    pool_vec = (m / denom)[:, None, :]                              # (B, 1, S)

    stacked = _stack_layer_params(params)
    return electra_fused_forward(emb, key_bias, pool_vec, stacked)


# ----------------------------------------------------------------------------
# Deterministic parameter init (synthetic — not loaded from a checkpoint).
# ----------------------------------------------------------------------------
def init_params(key):
    def normal(k, shape):
        return 0.02 * jax.random.normal(k, shape, dtype=jnp.float32)

    keys = jax.random.split(key, 3 + NUM_LAYERS)
    params = {
        "word_emb": normal(keys[0], (VOCAB_SIZE, HIDDEN)),
        "pos_emb": normal(keys[1], (MAX_POS, HIDDEN)),
        "type_emb": normal(keys[2], (TYPE_VOCAB_SIZE, HIDDEN)),
        "emb_ln_g": jnp.ones((1, HIDDEN), jnp.float32),
        "emb_ln_b": jnp.zeros((1, HIDDEN), jnp.float32),
        "layers": [],
    }
    for li in range(NUM_LAYERS):
        lk = jax.random.split(keys[3 + li], 6)
        params["layers"].append({
            "wq": normal(lk[0], (HIDDEN, HIDDEN)), "bq": jnp.zeros((1, HIDDEN), jnp.float32),
            "wk": normal(lk[1], (HIDDEN, HIDDEN)), "bk": jnp.zeros((1, HIDDEN), jnp.float32),
            "wv": normal(lk[2], (HIDDEN, HIDDEN)), "bv": jnp.zeros((1, HIDDEN), jnp.float32),
            "wo": normal(lk[3], (HIDDEN, HIDDEN)), "bo": jnp.zeros((1, HIDDEN), jnp.float32),
            "ln1_g": jnp.ones((1, HIDDEN), jnp.float32), "ln1_b": jnp.zeros((1, HIDDEN), jnp.float32),
            "w1": normal(lk[4], (HIDDEN, INTERMEDIATE)), "b1": jnp.zeros((1, INTERMEDIATE), jnp.float32),
            "w2": normal(lk[5], (INTERMEDIATE, HIDDEN)), "b2": jnp.zeros((1, HIDDEN), jnp.float32),
            "ln2_g": jnp.ones((1, HIDDEN), jnp.float32), "ln2_b": jnp.zeros((1, HIDDEN), jnp.float32),
        })
    return params


# ----------------------------------------------------------------------------
# Pure-JAX f32 reference (mirrors the PyTorch forward) for a correctness check.
# ----------------------------------------------------------------------------
def reference_forward(params, input_ids, attention_mask, token_type_ids):
    B, S = input_ids.shape
    H, nh = HIDDEN, NUM_HEADS
    dh = H // nh
    x = (params["word_emb"][input_ids] + params["pos_emb"][:S][None]
         + params["type_emb"][token_type_ids])
    x = _layer_norm(x, params["emb_ln_g"][0], params["emb_ln_b"][0])
    m = attention_mask.astype(jnp.float32)
    bias = (1.0 - m) * (-10000.0)
    for p in params["layers"]:
        q = (x @ p["wq"] + p["bq"][0]).reshape(B, S, nh, dh).transpose(0, 2, 1, 3)
        k = (x @ p["wk"] + p["bk"][0]).reshape(B, S, nh, dh).transpose(0, 2, 1, 3)
        v = (x @ p["wv"] + p["bv"][0]).reshape(B, S, nh, dh).transpose(0, 2, 1, 3)
        sc = jnp.einsum("bhqd,bhkd->bhqk", q, k) / math.sqrt(dh) + bias[:, None, None, :]
        pr = jax.nn.softmax(sc, axis=-1)
        ctx = jnp.einsum("bhqk,bhkd->bhqd", pr, v).transpose(0, 2, 1, 3).reshape(B, S, H)
        x = _layer_norm(x + ctx @ p["wo"] + p["bo"][0], p["ln1_g"][0], p["ln1_b"][0])
        ff = _gelu(x @ p["w1"] + p["b1"][0]) @ p["w2"] + p["b2"][0]
        x = _layer_norm(x + ff, p["ln2_g"][0], p["ln2_b"][0])
    me = m[:, :, None]
    return jnp.sum(x * me, axis=1) / jnp.maximum(jnp.sum(me, axis=1), 1e-9)


if __name__ == "__main__":
    key = jax.random.PRNGKey(0)
    pkey, ikey, tkey = jax.random.split(key, 3)
    params = init_params(pkey)

    B, S = 2, 8
    input_ids = jax.random.randint(ikey, (B, S), 0, VOCAB_SIZE, dtype=jnp.int32)
    attention_mask = jnp.array([[1, 1, 1, 1, 1, 1, 1, 1],
                                [1, 1, 1, 1, 1, 0, 0, 0]], dtype=jnp.int32)
    token_type_ids = jax.random.randint(tkey, (B, S), 0, TYPE_VOCAB_SIZE, dtype=jnp.int32)

    out = electra_encoder_forward(params, input_ids, attention_mask, token_type_ids)
    out = jax.block_until_ready(out)

    ref = reference_forward(params, input_ids, attention_mask, token_type_ids)
    assert out.shape == (B, HIDDEN)
    err = float(jnp.max(jnp.abs(out - ref)))
    # Tolerance covers bf16 MXU operands + approx reciprocal + tanh-GELU (~3e-4 obs. budget).
    assert err < 2e-3, f"max abs err {err}"
    print("KERNEL_OK")
</pallas_src>

<mosaic_0001>
module attributes {stable_mosaic.version = 11 : i64} {
  func.func @_electra_layer_kernel(%arg0: i32, %arg1: i32, %arg2: memref<1x8x32xf32, #tpu.memory_space<vmem>>, %arg3: memref<1x1x8xf32, #tpu.memory_space<vmem>>, %arg4: memref<1x1x8xf32, #tpu.memory_space<vmem>>, %arg5: memref<1x32xf32, #tpu.memory_space<vmem>>, %arg6: memref<1x32xf32, #tpu.memory_space<vmem>>, %arg7: memref<1x32x96xbf16, #tpu.memory_space<vmem>>, %arg8: memref<1x1x96xf32, #tpu.memory_space<vmem>>, %arg9: memref<1x4x8x32xbf16, #tpu.memory_space<vmem>>, %arg10: memref<1x1x32xf32, #tpu.memory_space<vmem>>, %arg11: memref<1x1x32xf32, #tpu.memory_space<vmem>>, %arg12: memref<1x1x32xf32, #tpu.memory_space<vmem>>, %arg13: memref<1x32x64xbf16, #tpu.memory_space<vmem>>, %arg14: memref<1x1x64xf32, #tpu.memory_space<vmem>>, %arg15: memref<1x64x32xbf16, #tpu.memory_space<vmem>>, %arg16: memref<1x1x32xf32, #tpu.memory_space<vmem>>, %arg17: memref<1x1x32xf32, #tpu.memory_space<vmem>>, %arg18: memref<1x1x32xf32, #tpu.memory_space<vmem>>, %arg19: memref<1x1x32xf32, #tpu.memory_space<vmem>>, %arg20: memref<8x32xf32, #tpu.memory_space<vmem>>) attributes {dimension_semantics = [#tpu.dimension_semantics<parallel>, #tpu.dimension_semantics<arbitrary>], iteration_bounds = array<i64: 2, 2>, scalar_prefetch = 0 : i64, scratch_operands = 1 : i64, tpu.core_type = #tpu.core_type<tc>, window_params = [{transform_indices = @transform_0, window_bounds = array<i64: 1, 8, 32>}, {transform_indices = @transform_1, window_bounds = array<i64: 1, 1, 8>}, {transform_indices = @transform_2, window_bounds = array<i64: 1, 1, 8>}, {pipeline_mode = #tpu.pipeline_mode<synchronous>, transform_indices = @transform_3, window_bounds = array<i64: 1, 32>}, {pipeline_mode = #tpu.pipeline_mode<synchronous>, transform_indices = @transform_4, window_bounds = array<i64: 1, 32>}, {transform_indices = @transform_5, window_bounds = array<i64: 1, 32, 96>}, {transform_indices = @transform_6, window_bounds = array<i64: 1, 1, 96>}, {transform_indices = @transform_7, window_bounds = array<i64: 1, 4, 8, 32>}, {transform_indices = @transform_8, window_bounds = array<i64: 1, 1, 32>}, {transform_indices = @transform_9, window_bounds = array<i64: 1, 1, 32>}, {transform_indices = @transform_10, window_bounds = array<i64: 1, 1, 32>}, {transform_indices = @transform_11, window_bounds = array<i64: 1, 32, 64>}, {transform_indices = @transform_12, window_bounds = array<i64: 1, 1, 64>}, {transform_indices = @transform_13, window_bounds = array<i64: 1, 64, 32>}, {transform_indices = @transform_14, window_bounds = array<i64: 1, 1, 32>}, {transform_indices = @transform_15, window_bounds = array<i64: 1, 1, 32>}, {transform_indices = @transform_16, window_bounds = array<i64: 1, 1, 32>}, {transform_indices = @transform_17, window_bounds = array<i64: 1, 1, 32>}]} {
    %c0_i32 = arith.constant 0 : i32
    %0 = arith.cmpi eq, %arg1, %c0_i32 : i32
    %1 = arith.extui %0 : i1 to i32
    %c0_i32_0 = arith.constant 0 : i32
    %2 = arith.cmpi ne, %1, %c0_i32_0 : i32
    scf.if %2 {
      %c0_86 = arith.constant 0 : index
      %c0_87 = arith.constant 0 : index
      %c0_88 = arith.constant 0 : index
      %204 = vector.load %arg2[%c0_86, %c0_87, %c0_88] : memref<1x8x32xf32, #tpu.memory_space<vmem>>, vector<1x8x32xf32>
      %205 = vector.shape_cast %204 : vector<1x8x32xf32> to vector<8x32xf32>
      %c0_89 = arith.constant 0 : index
      %c0_90 = arith.constant 0 : index
      %206 = vector.load %arg5[%c0_89, %c0_90] : memref<1x32xf32, #tpu.memory_space<vmem>>, vector<1x32xf32>
      %c0_91 = arith.constant 0 : index
      %c0_92 = arith.constant 0 : index
      %207 = vector.load %arg6[%c0_91, %c0_92] : memref<1x32xf32, #tpu.memory_space<vmem>>, vector<1x32xf32>
      %cst_93 = arith.constant dense<0.000000e+00> : vector<8xf32>
      %208 = vector.multi_reduction <add>, %205, %cst_93 [1] : vector<8x32xf32> to vector<8xf32>
      %209 = vector.shape_cast %208 : vector<8xf32> to vector<8x1xf32>
      %cst_94 = arith.constant 3.200000e+01 : f32
      %210 = vector.broadcast %cst_94 : f32 to vector<8x1xf32>
      %211 = arith.divf %209, %210 : vector<8x1xf32>
      %212 = vector.broadcast %211 : vector<8x1xf32> to vector<8x32xf32>
      %213 = arith.subf %205, %212 : vector<8x32xf32>
      %214 = arith.mulf %213, %213 : vector<8x32xf32>
      %cst_95 = arith.constant dense<0.000000e+00> : vector<8xf32>
      %215 = vector.multi_reduction <add>, %214, %cst_95 [1] : vector<8x32xf32> to vector<8xf32>
      %216 = vector.shape_cast %215 : vector<8xf32> to vector<8x1xf32>
      %cst_96 = arith.constant 3.200000e+01 : f32
      %217 = vector.broadcast %cst_96 : f32 to vector<8x1xf32>
      %218 = arith.divf %216, %217 : vector<8x1xf32>
      %219 = vector.broadcast %211 : vector<8x1xf32> to vector<8x32xf32>
      %220 = arith.subf %205, %219 : vector<8x32xf32>
      %cst_97 = arith.constant 9.99999996E-13 : f32
      %221 = vector.broadcast %cst_97 : f32 to vector<8x1xf32>
      %222 = arith.addf %218, %221 : vector<8x1xf32>
      %223 = math.rsqrt %222 : vector<8x1xf32>
      %224 = vector.broadcast %223 : vector<8x1xf32> to vector<8x32xf32>
      %225 = arith.mulf %220, %224 : vector<8x32xf32>
      %226 = vector.broadcast %206 : vector<1x32xf32> to vector<8x32xf32>
      %227 = arith.mulf %225, %226 : vector<8x32xf32>
      %228 = vector.broadcast %207 : vector<1x32xf32> to vector<8x32xf32>
      %229 = arith.addf %227, %228 : vector<8x32xf32>
      %c0_98 = arith.constant 0 : index
      %c0_99 = arith.constant 0 : index
      %230 = vector.load %arg20[%c0_98, %c0_99] : memref<8x32xf32, #tpu.memory_space<vmem>>, vector<8x32xf32>
      tpu.vector_store %arg20[%c0_98, %c0_99], %229 {strides = array<i32>} : memref<8x32xf32, #tpu.memory_space<vmem>>, vector<8x32xf32>,
    } else {
    }
    %c0 = arith.constant 0 : index
    %c0_1 = arith.constant 0 : index
    %3 = vector.load %arg20[%c0, %c0_1] : memref<8x32xf32, #tpu.memory_space<vmem>>, vector<8x32xf32>
    %c0_2 = arith.constant 0 : index
    %c0_3 = arith.constant 0 : index
    %c0_4 = arith.constant 0 : index
    %4 = vector.load %arg3[%c0_2, %c0_3, %c0_4] : memref<1x1x8xf32, #tpu.memory_space<vmem>>, vector<1x1x8xf32>
    %5 = vector.shape_cast %4 : vector<1x1x8xf32> to vector<1x8xf32>
    %c0_5 = arith.constant 0 : index
    %c0_6 = arith.constant 0 : index
    %c0_7 = arith.constant 0 : index
    %6 = vector.load %arg7[%c0_5, %c0_6, %c0_7] : memref<1x32x96xbf16, #tpu.memory_space<vmem>>, vector<1x32x96xbf16>
    %7 = vector.shape_cast %6 : vector<1x32x96xbf16> to vector<32x96xbf16>
    %8 = arith.truncf %3 : vector<8x32xf32> to vector<8x32xbf16>
    %cst = arith.constant dense<0.000000e+00> : vector<8x96xf32>
    %9 = tpu.matmul %8, %7, %cst {dimension_numbers = #tpu.dot_dimension_numbers<[1], [0], [0], [1], [0, 0, 1, 1], [], []>} : vector<8x32xbf16>, vector<32x96xbf16>, vector<8x96xf32> -> vector<8x96xf32>
    %c0_8 = arith.constant 0 : index
    %c0_9 = arith.constant 0 : index
    %c0_10 = arith.constant 0 : index
    %10 = vector.load %arg8[%c0_8, %c0_9, %c0_10] : memref<1x1x96xf32, #tpu.memory_space<vmem>>, vector<1x1x96xf32>
    %11 = vector.shape_cast %10 : vector<1x1x96xf32> to vector<1x96xf32>
    %12 = vector.broadcast %11 : vector<1x96xf32> to vector<8x96xf32>
    %13 = arith.addf %9, %12 : vector<8x96xf32>
    %c0_11 = arith.constant 0 : index
    %c0_12 = arith.constant 0 : index
    %c0_13 = arith.constant 0 : index
    %c0_14 = arith.constant 0 : index
    %14 = vector.load %arg9[%c0_11, %c0_12, %c0_13, %c0_14] : memref<1x4x8x32xbf16, #tpu.memory_space<vmem>>, vector<1x4x8x32xbf16>
    %15 = vector.shape_cast %14 : vector<1x4x8x32xbf16> to vector<4x8x32xbf16>
    %cst_15 = arith.constant 0.000000e+00 : f32
    %16 = vector.broadcast %cst_15 : f32 to vector<8x32xf32>
    %17 = vector.extract_strided_slice %13 {offsets = [0, 0], sizes = [8, 8], strides = [1, 1]} : vector<8x96xf32> to vector<8x8xf32>
    %18 = vector.extract_strided_slice %13 {offsets = [0, 32], sizes = [8, 8], strides = [1, 1]} : vector<8x96xf32> to vector<8x8xf32>
    %19 = vector.extract_strided_slice %13 {offsets = [0, 64], sizes = [8, 8], strides = [1, 1]} : vector<8x96xf32> to vector<8x8xf32>
    %cst_16 = arith.constant dense<0.000000e+00> : vector<8x8xf32>
    %20 = tpu.matmul %17, %18, %cst_16 {dimension_numbers = #tpu.dot_dimension_numbers<[1], [1], [0], [0], [0, 0, 1, 0], [], []>} : vector<8x8xf32>, vector<8x8xf32>, vector<8x8xf32> -> vector<8x8xf32>
    %cst_17 = arith.constant 0.353553385 : f32
    %21 = vector.broadcast %cst_17 : f32 to vector<8x8xf32>
    %22 = arith.mulf %20, %21 : vector<8x8xf32>
    %23 = vector.broadcast %5 : vector<1x8xf32> to vector<8x8xf32>
    %24 = arith.addf %22, %23 : vector<8x8xf32>
    %cst_18 = arith.constant dense<0xFF800000> : vector<8xf32>
    %25 = vector.multi_reduction <maximumf>, %24, %cst_18 [1] : vector<8x8xf32> to vector<8xf32>
    %26 = vector.shape_cast %25 : vector<8xf32> to vector<8x1xf32>
    %27 = vector.broadcast %26 : vector<8x1xf32> to vector<8x8xf32>
    %28 = arith.subf %24, %27 : vector<8x8xf32>
    %29 = math.exp %28 : vector<8x8xf32>
    %cst_19 = arith.constant dense<0.000000e+00> : vector<8xf32>
    %30 = vector.multi_reduction <add>, %29, %cst_19 [1] : vector<8x8xf32> to vector<8xf32>
    %31 = vector.shape_cast %30 : vector<8xf32> to vector<8x1xf32>
    %32 = tpu.reciprocal %31 {approx = true} : vector<8x1xf32> -> vector<8x1xf32>
    %33 = vector.broadcast %32 : vector<8x1xf32> to vector<8x8xf32>
    %34 = arith.mulf %29, %33 : vector<8x8xf32>
    %cst_20 = arith.constant dense<0.000000e+00> : vector<8x8xf32>
    %35 = tpu.matmul %34, %19, %cst_20 {dimension_numbers = #tpu.dot_dimension_numbers<[1], [0], [0], [1], [0, 0, 1, 1], [], []>} : vector<8x8xf32>, vector<8x8xf32>, vector<8x8xf32> -> vector<8x8xf32>
    %36 = vector.extract_strided_slice %15 {offsets = [0, 0, 0], sizes = [1, 8, 32], strides = [1, 1, 1]} : vector<4x8x32xbf16> to vector<1x8x32xbf16>
    %37 = vector.shape_cast %36 : vector<1x8x32xbf16> to vector<8x32xbf16>
    %38 = arith.truncf %35 : vector<8x8xf32> to vector<8x8xbf16>
    %cst_21 = arith.constant dense<0.000000e+00> : vector<8x32xf32>
    %39 = tpu.matmul %38, %37, %cst_21 {dimension_numbers = #tpu.dot_dimension_numbers<[1], [0], [0], [1], [0, 0, 1, 1], [], []>} : vector<8x8xbf16>, vector<8x32xbf16>, vector<8x32xf32> -> vector<8x32xf32>
    %40 = arith.addf %16, %39 : vector<8x32xf32>
    %41 = vector.extract_strided_slice %13 {offsets = [0, 8], sizes = [8, 8], strides = [1, 1]} : vector<8x96xf32> to vector<8x8xf32>
    %42 = vector.extract_strided_slice %13 {offsets = [0, 40], sizes = [8, 8], strides = [1, 1]} : vector<8x96xf32> to vector<8x8xf32>
    %43 = vector.extract_strided_slice %13 {offsets = [0, 72], sizes = [8, 8], strides = [1, 1]} : vector<8x96xf32> to vector<8x8xf32>
    %cst_22 = arith.constant dense<0.000000e+00> : vector<8x8xf32>
    %44 = tpu.matmul %41, %42, %cst_22 {dimension_numbers = #tpu.dot_dimension_numbers<[1], [1], [0], [0], [0, 0, 1, 0], [], []>} : vector<8x8xf32>, vector<8x8xf32>, vector<8x8xf32> -> vector<8x8xf32>
    %cst_23 = arith.constant 0.353553385 : f32
    %45 = vector.broadcast %cst_23 : f32 to vector<8x8xf32>
    %46 = arith.mulf %44, %45 : vector<8x8xf32>
    %47 = vector.broadcast %5 : vector<1x8xf32> to vector<8x8xf32>
    %48 = arith.addf %46, %47 : vector<8x8xf32>
    %cst_24 = arith.constant dense<0xFF800000> : vector<8xf32>
    %49 = vector.multi_reduction <maximumf>, %48, %cst_24 [1] : vector<8x8xf32> to vector<8xf32>
    %50 = vector.shape_cast %49 : vector<8xf32> to vector<8x1xf32>
    %51 = vector.broadcast %50 : vector<8x1xf32> to vector<8x8xf32>
    %52 = arith.subf %48, %51 : vector<8x8xf32>
    %53 = math.exp %52 : vector<8x8xf32>
    %cst_25 = arith.constant dense<0.000000e+00> : vector<8xf32>
    %54 = vector.multi_reduction <add>, %53, %cst_25 [1] : vector<8x8xf32> to vector<8xf32>
    %55 = vector.shape_cast %54 : vector<8xf32> to vector<8x1xf32>
    %56 = tpu.reciprocal %55 {approx = true} : vector<8x1xf32> -> vector<8x1xf32>
    %57 = vector.broadcast %56 : vector<8x1xf32> to vector<8x8xf32>
    %58 = arith.mulf %53, %57 : vector<8x8xf32>
    %cst_26 = arith.constant dense<0.000000e+00> : vector<8x8xf32>
    %59 = tpu.matmul %58, %43, %cst_26 {dimension_numbers = #tpu.dot_dimension_numbers<[1], [0], [0], [1], [0, 0, 1, 1], [], []>} : vector<8x8xf32>, vector<8x8xf32>, vector<8x8xf32> -> vector<8x8xf32>
    %60 = vector.extract_strided_slice %15 {offsets = [1, 0, 0], sizes = [1, 8, 32], strides = [1, 1, 1]} : vector<4x8x32xbf16> to vector<1x8x32xbf16>
    %61 = vector.shape_cast %60 : vector<1x8x32xbf16> to vector<8x32xbf16>
    %62 = arith.truncf %59 : vector<8x8xf32> to vector<8x8xbf16>
    %cst_27 = arith.constant dense<0.000000e+00> : vector<8x32xf32>
    %63 = tpu.matmul %62, %61, %cst_27 {dimension_numbers = #tpu.dot_dimension_numbers<[1], [0], [0], [1], [0, 0, 1, 1], [], []>} : vector<8x8xbf16>, vector<8x32xbf16>, vector<8x32xf32> -> vector<8x32xf32>
    %64 = arith.addf %40, %63 : vector<8x32xf32>
    %65 = vector.extract_strided_slice %13 {offsets = [0, 16], sizes = [8, 8], strides = [1, 1]} : vector<8x96xf32> to vector<8x8xf32>
    %66 = vector.extract_strided_slice %13 {offsets = [0, 48], sizes = [8, 8], strides = [1, 1]} : vector<8x96xf32> to vector<8x8xf32>
    %67 = vector.extract_strided_slice %13 {offsets = [0, 80], sizes = [8, 8], strides = [1, 1]} : vector<8x96xf32> to vector<8x8xf32>
    %cst_28 = arith.constant dense<0.000000e+00> : vector<8x8xf32>
    %68 = tpu.matmul %65, %66, %cst_28 {dimension_numbers = #tpu.dot_dimension_numbers<[1], [1], [0], [0], [0, 0, 1, 0], [], []>} : vector<8x8xf32>, vector<8x8xf32>, vector<8x8xf32> -> vector<8x8xf32>
    %cst_29 = arith.constant 0.353553385 : f32
    %69 = vector.broadcast %cst_29 : f32 to vector<8x8xf32>
    %70 = arith.mulf %68, %69 : vector<8x8xf32>
    %71 = vector.broadcast %5 : vector<1x8xf32> to vector<8x8xf32>
    %72 = arith.addf %70, %71 : vector<8x8xf32>
    %cst_30 = arith.constant dense<0xFF800000> : vector<8xf32>
    %73 = vector.multi_reduction <maximumf>, %72, %cst_30 [1] : vector<8x8xf32> to vector<8xf32>
    %74 = vector.shape_cast %73 : vector<8xf32> to vector<8x1xf32>
    %75 = vector.broadcast %74 : vector<8x1xf32> to vector<8x8xf32>
    %76 = arith.subf %72, %75 : vector<8x8xf32>
    %77 = math.exp %76 : vector<8x8xf32>
    %cst_31 = arith.constant dense<0.000000e+00> : vector<8xf32>
    %78 = vector.multi_reduction <add>, %77, %cst_31 [1] : vector<8x8xf32> to vector<8xf32>
    %79 = vector.shape_cast %78 : vector<8xf32> to vector<8x1xf32>
    %80 = tpu.reciprocal %79 {approx = true} : vector<8x1xf32> -> vector<8x1xf32>
    %81 = vector.broadcast %80 : vector<8x1xf32> to vector<8x8xf32>
    %82 = arith.mulf %77, %81 : vector<8x8xf32>
    %cst_32 = arith.constant dense<0.000000e+00> : vector<8x8xf32>
    %83 = tpu.matmul %82, %67, %cst_32 {dimension_numbers = #tpu.dot_dimension_numbers<[1], [0], [0], [1], [0, 0, 1, 1], [], []>} : vector<8x8xf32>, vector<8x8xf32>, vector<8x8xf32> -> vector<8x8xf32>
    %84 = vector.extract_strided_slice %15 {offsets = [2, 0, 0], sizes = [1, 8, 32], strides = [1, 1, 1]} : vector<4x8x32xbf16> to vector<1x8x32xbf16>
    %85 = vector.shape_cast %84 : vector<1x8x32xbf16> to vector<8x32xbf16>
    %86 = arith.truncf %83 : vector<8x8xf32> to vector<8x8xbf16>
    %cst_33 = arith.constant dense<0.000000e+00> : vector<8x32xf32>
    %87 = tpu.matmul %86, %85, %cst_33 {dimension_numbers = #tpu.dot_dimension_numbers<[1], [0], [0], [1], [0, 0, 1, 1], [], []>} : vector<8x8xbf16>, vector<8x32xbf16>, vector<8x32xf32> -> vector<8x32xf32>
    %88 = arith.addf %64, %87 : vector<8x32xf32>
    %89 = vector.extract_strided_slice %13 {offsets = [0, 24], sizes = [8, 8], strides = [1, 1]} : vector<8x96xf32> to vector<8x8xf32>
    %90 = vector.extract_strided_slice %13 {offsets = [0, 56], sizes = [8, 8], strides = [1, 1]} : vector<8x96xf32> to vector<8x8xf32>
    %91 = vector.extract_strided_slice %13 {offsets = [0, 88], sizes = [8, 8], strides = [1, 1]} : vector<8x96xf32> to vector<8x8xf32>
    %cst_34 = arith.constant dense<0.000000e+00> : vector<8x8xf32>
    %92 = tpu.matmul %89, %90, %cst_34 {dimension_numbers = #tpu.dot_dimension_numbers<[1], [1], [0], [0], [0, 0, 1, 0], [], []>} : vector<8x8xf32>, vector<8x8xf32>, vector<8x8xf32> -> vector<8x8xf32>
    %cst_35 = arith.constant 0.353553385 : f32
    %93 = vector.broadcast %cst_35 : f32 to vector<8x8xf32>
    %94 = arith.mulf %92, %93 : vector<8x8xf32>
    %95 = vector.broadcast %5 : vector<1x8xf32> to vector<8x8xf32>
    %96 = arith.addf %94, %95 : vector<8x8xf32>
    %cst_36 = arith.constant dense<0xFF800000> : vector<8xf32>
    %97 = vector.multi_reduction <maximumf>, %96, %cst_36 [1] : vector<8x8xf32> to vector<8xf32>
    %98 = vector.shape_cast %97 : vector<8xf32> to vector<8x1xf32>
    %99 = vector.broadcast %98 : vector<8x1xf32> to vector<8x8xf32>
    %100 = arith.subf %96, %99 : vector<8x8xf32>
    %101 = math.exp %100 : vector<8x8xf32>
    %cst_37 = arith.constant dense<0.000000e+00> : vector<8xf32>
    %102 = vector.multi_reduction <add>, %101, %cst_37 [1] : vector<8x8xf32> to vector<8xf32>
    %103 = vector.shape_cast %102 : vector<8xf32> to vector<8x1xf32>
    %104 = tpu.reciprocal %103 {approx = true} : vector<8x1xf32> -> vector<8x1xf32>
    %105 = vector.broadcast %104 : vector<8x1xf32> to vector<8x8xf32>
    %106 = arith.mulf %101, %105 : vector<8x8xf32>
    %cst_38 = arith.constant dense<0.000000e+00> : vector<8x8xf32>
    %107 = tpu.matmul %106, %91, %cst_38 {dimension_numbers = #tpu.dot_dimension_numbers<[1], [0], [0], [1], [0, 0, 1, 1], [], []>} : vector<8x8xf32>, vector<8x8xf32>, vector<8x8xf32> -> vector<8x8xf32>
    %108 = vector.extract_strided_slice %15 {offsets = [3, 0, 0], sizes = [1, 8, 32], strides = [1, 1, 1]} : vector<4x8x32xbf16> to vector<1x8x32xbf16>
    %109 = vector.shape_cast %108 : vector<1x8x32xbf16> to vector<8x32xbf16>
    %110 = arith.truncf %107 : vector<8x8xf32> to vector<8x8xbf16>
    %cst_39 = arith.constant dense<0.000000e+00> : vector<8x32xf32>
    %111 = tpu.matmul %110, %109, %cst_39 {dimension_numbers = #tpu.dot_dimension_numbers<[1], [0], [0], [1], [0, 0, 1, 1], [], []>} : vector<8x8xbf16>, vector<8x32xbf16>, vector<8x32xf32> -> vector<8x32xf32>
    %112 = arith.addf %88, %111 : vector<8x32xf32>
    %113 = arith.addf %3, %112 : vector<8x32xf32>
    %c0_40 = arith.constant 0 : index
    %c0_41 = arith.constant 0 : index
    %c0_42 = arith.constant 0 : index
    %114 = vector.load %arg10[%c0_40, %c0_41, %c0_42] : memref<1x1x32xf32, #tpu.memory_space<vmem>>, vector<1x1x32xf32>
    %115 = vector.shape_cast %114 : vector<1x1x32xf32> to vector<1x32xf32>
    %116 = vector.broadcast %115 : vector<1x32xf32> to vector<8x32xf32>
    %117 = arith.addf %113, %116 : vector<8x32xf32>
    %c0_43 = arith.constant 0 : index
    %c0_44 = arith.constant 0 : index
    %c0_45 = arith.constant 0 : index
    %118 = vector.load %arg11[%c0_43, %c0_44, %c0_45] : memref<1x1x32xf32, #tpu.memory_space<vmem>>, vector<1x1x32xf32>
    %119 = vector.shape_cast %118 : vector<1x1x32xf32> to vector<1x32xf32>
    %c0_46 = arith.constant 0 : index
    %c0_47 = arith.constant 0 : index
    %c0_48 = arith.constant 0 : index
    %120 = vector.load %arg12[%c0_46, %c0_47, %c0_48] : memref<1x1x32xf32, #tpu.memory_space<vmem>>, vector<1x1x32xf32>
    %121 = vector.shape_cast %120 : vector<1x1x32xf32> to vector<1x32xf32>
    %cst_49 = arith.constant dense<0.000000e+00> : vector<8xf32>
    %122 = vector.multi_reduction <add>, %117, %cst_49 [1] : vector<8x32xf32> to vector<8xf32>
    %123 = vector.shape_cast %122 : vector<8xf32> to vector<8x1xf32>
    %cst_50 = arith.constant 3.200000e+01 : f32
    %124 = vector.broadcast %cst_50 : f32 to vector<8x1xf32>
    %125 = arith.divf %123, %124 : vector<8x1xf32>
    %126 = vector.broadcast %125 : vector<8x1xf32> to vector<8x32xf32>
    %127 = arith.subf %117, %126 : vector<8x32xf32>
    %128 = arith.mulf %127, %127 : vector<8x32xf32>
    %cst_51 = arith.constant dense<0.000000e+00> : vector<8xf32>
    %129 = vector.multi_reduction <add>, %128, %cst_51 [1] : vector<8x32xf32> to vector<8xf32>
    %130 = vector.shape_cast %129 : vector<8xf32> to vector<8x1xf32>
    %cst_52 = arith.constant 3.200000e+01 : f32
    %131 = vector.broadcast %cst_52 : f32 to vector<8x1xf32>
    %132 = arith.divf %130, %131 : vector<8x1xf32>
    %133 = vector.broadcast %125 : vector<8x1xf32> to vector<8x32xf32>
    %134 = arith.subf %117, %133 : vector<8x32xf32>
    %cst_53 = arith.constant 9.99999996E-13 : f32
    %135 = vector.broadcast %cst_53 : f32 to vector<8x1xf32>
    %136 = arith.addf %132, %135 : vector<8x1xf32>
    %137 = math.rsqrt %136 : vector<8x1xf32>
    %138 = vector.broadcast %137 : vector<8x1xf32> to vector<8x32xf32>
    %139 = arith.mulf %134, %138 : vector<8x32xf32>
    %140 = vector.broadcast %119 : vector<1x32xf32> to vector<8x32xf32>
    %141 = arith.mulf %139, %140 : vector<8x32xf32>
    %142 = vector.broadcast %121 : vector<1x32xf32> to vector<8x32xf32>
    %143 = arith.addf %141, %142 : vector<8x32xf32>
    %c0_54 = arith.constant 0 : index
    %c0_55 = arith.constant 0 : index
    %c0_56 = arith.constant 0 : index
    %144 = vector.load %arg13[%c0_54, %c0_55, %c0_56] : memref<1x32x64xbf16, #tpu.memory_space<vmem>>, vector<1x32x64xbf16>
    %145 = vector.shape_cast %144 : vector<1x32x64xbf16> to vector<32x64xbf16>
    %146 = arith.truncf %143 : vector<8x32xf32> to vector<8x32xbf16>
    %cst_57 = arith.constant dense<0.000000e+00> : vector<8x64xf32>
    %147 = tpu.matmul %146, %145, %cst_57 {dimension_numbers = #tpu.dot_dimension_numbers<[1], [0], [0], [1], [0, 0, 1, 1], [], []>} : vector<8x32xbf16>, vector<32x64xbf16>, vector<8x64xf32> -> vector<8x64xf32>
    %c0_58 = arith.constant 0 : index
    %c0_59 = arith.constant 0 : index
    %c0_60 = arith.constant 0 : index
    %148 = vector.load %arg14[%c0_58, %c0_59, %c0_60] : memref<1x1x64xf32, #tpu.memory_space<vmem>>, vector<1x1x64xf32>
    %149 = vector.shape_cast %148 : vector<1x1x64xf32> to vector<1x64xf32>
    %150 = vector.broadcast %149 : vector<1x64xf32> to vector<8x64xf32>
    %151 = arith.addf %147, %150 : vector<8x64xf32>
    %cst_61 = arith.constant 5.000000e-01 : f32
    %152 = vector.broadcast %cst_61 : f32 to vector<8x64xf32>
    %153 = arith.mulf %152, %151 : vector<8x64xf32>
    %cst_62 = arith.constant 4.471500e-02 : f32
    %154 = vector.broadcast %cst_62 : f32 to vector<8x64xf32>
    %155 = arith.mulf %154, %151 : vector<8x64xf32>
    %156 = arith.mulf %155, %151 : vector<8x64xf32>
    %157 = arith.mulf %156, %151 : vector<8x64xf32>
    %158 = arith.addf %151, %157 : vector<8x64xf32>
    %cst_63 = arith.constant 0.797884583 : f32
    %159 = vector.broadcast %cst_63 : f32 to vector<8x64xf32>
    %160 = arith.mulf %159, %158 : vector<8x64xf32>
    %161 = math.tanh %160 : vector<8x64xf32>
    %cst_64 = arith.constant 1.000000e+00 : f32
    %162 = vector.broadcast %cst_64 : f32 to vector<8x64xf32>
    %163 = arith.addf %162, %161 : vector<8x64xf32>
    %164 = arith.mulf %153, %163 : vector<8x64xf32>
    %c0_65 = arith.constant 0 : index
    %c0_66 = arith.constant 0 : index
    %c0_67 = arith.constant 0 : index
    %165 = vector.load %arg15[%c0_65, %c0_66, %c0_67] : memref<1x64x32xbf16, #tpu.memory_space<vmem>>, vector<1x64x32xbf16>
    %166 = vector.shape_cast %165 : vector<1x64x32xbf16> to vector<64x32xbf16>
    %167 = arith.truncf %164 : vector<8x64xf32> to vector<8x64xbf16>
    %cst_68 = arith.constant dense<0.000000e+00> : vector<8x32xf32>
    %168 = tpu.matmul %167, %166, %cst_68 {dimension_numbers = #tpu.dot_dimension_numbers<[1], [0], [0], [1], [0, 0, 1, 1], [], []>} : vector<8x64xbf16>, vector<64x32xbf16>, vector<8x32xf32> -> vector<8x32xf32>
    %c0_69 = arith.constant 0 : index
    %c0_70 = arith.constant 0 : index
    %c0_71 = arith.constant 0 : index
    %169 = vector.load %arg16[%c0_69, %c0_70, %c0_71] : memref<1x1x32xf32, #tpu.memory_space<vmem>>, vector<1x1x32xf32>
    %170 = vector.shape_cast %169 : vector<1x1x32xf32> to vector<1x32xf32>
    %171 = vector.broadcast %170 : vector<1x32xf32> to vector<8x32xf32>
    %172 = arith.addf %168, %171 : vector<8x32xf32>
    %173 = arith.addf %143, %172 : vector<8x32xf32>
    %c0_72 = arith.constant 0 : index
    %c0_73 = arith.constant 0 : index
    %c0_74 = arith.constant 0 : index
    %174 = vector.load %arg17[%c0_72, %c0_73, %c0_74] : memref<1x1x32xf32, #tpu.memory_space<vmem>>, vector<1x1x32xf32>
    %175 = vector.shape_cast %174 : vector<1x1x32xf32> to vector<1x32xf32>
    %c0_75 = arith.constant 0 : index
    %c0_76 = arith.constant 0 : index
    %c0_77 = arith.constant 0 : index
    %176 = vector.load %arg18[%c0_75, %c0_76, %c0_77] : memref<1x1x32xf32, #tpu.memory_space<vmem>>, vector<1x1x32xf32>
    %177 = vector.shape_cast %176 : vector<1x1x32xf32> to vector<1x32xf32>
    %cst_78 = arith.constant dense<0.000000e+00> : vector<8xf32>
    %178 = vector.multi_reduction <add>, %173, %cst_78 [1] : vector<8x32xf32> to vector<8xf32>
    %179 = vector.shape_cast %178 : vector<8xf32> to vector<8x1xf32>
    %cst_79 = arith.constant 3.200000e+01 : f32
    %180 = vector.broadcast %cst_79 : f32 to vector<8x1xf32>
    %181 = arith.divf %179, %180 : vector<8x1xf32>
    %182 = vector.broadcast %181 : vector<8x1xf32> to vector<8x32xf32>
    %183 = arith.subf %173, %182 : vector<8x32xf32>
    %184 = arith.mulf %183, %183 : vector<8x32xf32>
    %cst_80 = arith.constant dense<0.000000e+00> : vector<8xf32>
    %185 = vector.multi_reduction <add>, %184, %cst_80 [1] : vector<8x32xf32> to vector<8xf32>
    %186 = vector.shape_cast %185 : vector<8xf32> to vector<8x1xf32>
    %cst_81 = arith.constant 3.200000e+01 : f32
    %187 = vector.broadcast %cst_81 : f32 to vector<8x1xf32>
    %188 = arith.divf %186, %187 : vector<8x1xf32>
    %189 = vector.broadcast %181 : vector<8x1xf32> to vector<8x32xf32>
    %190 = arith.subf %173, %189 : vector<8x32xf32>
    %cst_82 = arith.constant 9.99999996E-13 : f32
    %191 = vector.broadcast %cst_82 : f32 to vector<8x1xf32>
    %192 = arith.addf %188, %191 : vector<8x1xf32>
    %193 = math.rsqrt %192 : vector<8x1xf32>
    %194 = vector.broadcast %193 : vector<8x1xf32> to vector<8x32xf32>
    %195 = arith.mulf %190, %194 : vector<8x32xf32>
    %196 = vector.broadcast %175 : vector<1x32xf32> to vector<8x32xf32>
    %197 = arith.mulf %195, %196 : vector<8x32xf32>
    %198 = vector.broadcast %177 : vector<1x32xf32> to vector<8x32xf32>
    %199 = arith.addf %197, %198 : vector<8x32xf32>
    %c0_83 = arith.constant 0 : index
    %c0_84 = arith.constant 0 : index
    %200 = vector.load %arg20[%c0_83, %c0_84] : memref<8x32xf32, #tpu.memory_space<vmem>>, vector<8x32xf32>
    tpu.vector_store %arg20[%c0_83, %c0_84], %199 {strides = array<i32>} : memref<8x32xf32, #tpu.memory_space<vmem>>, vector<8x32xf32>,
    %c1_i32 = arith.constant 1 : i32
    %201 = arith.cmpi eq, %arg1, %c1_i32 : i32
    %202 = arith.extui %201 : i1 to i32
    %c0_i32_85 = arith.constant 0 : i32
    %203 = arith.cmpi ne, %202, %c0_i32_85 : i32
    scf.if %203 {
      %c0_86 = arith.constant 0 : index
      %c0_87 = arith.constant 0 : index
      %c0_88 = arith.constant 0 : index
      %204 = vector.load %arg4[%c0_86, %c0_87, %c0_88] : memref<1x1x8xf32, #tpu.memory_space<vmem>>, vector<1x1x8xf32>
      %205 = vector.shape_cast %204 : vector<1x1x8xf32> to vector<1x8xf32>
      %cst_89 = arith.constant dense<0.000000e+00> : vector<1x32xf32>
      %206 = tpu.matmul %205, %199, %cst_89 {dimension_numbers = #tpu.dot_dimension_numbers<[1], [0], [0], [1], [0, 0, 1, 1], [], []>} : vector<1x8xf32>, vector<8x32xf32>, vector<1x32xf32> -> vector<1x32xf32>
      %c0_90 = arith.constant 0 : index
      %c0_91 = arith.constant 0 : index
      %c0_92 = arith.constant 0 : index
      %207 = vector.load %arg19[%c0_90, %c0_91, %c0_92] : memref<1x1x32xf32, #tpu.memory_space<vmem>>, vector<1x1x32xf32>
      %208 = vector.shape_cast %207 : vector<1x1x32xf32> to vector<1x32xf32>
      %209 = vector.shape_cast %206 : vector<1x32xf32> to vector<1x1x32xf32>
      tpu.vector_store %arg19[%c0_90, %c0_91, %c0_92], %209 {strides = array<i32>} : memref<1x1x32xf32, #tpu.memory_space<vmem>>, vector<1x1x32xf32>,
    } else {
    }
    return
  }
  func.func @transform_0(%arg0: i32, %arg1: i32) -> (i32, i32, i32) {
    %c0_i32 = arith.constant 0 : i32
    %c0_i32_0 = arith.constant 0 : i32
    %c0_i32_1 = arith.constant 0 : i32
    return %arg0, %c0_i32, %c0_i32_0 : i32, i32, i32
  }
  func.func @transform_1(%arg0: i32, %arg1: i32) -> (i32, i32, i32) {
    %c0_i32 = arith.constant 0 : i32
    %c0_i32_0 = arith.constant 0 : i32
    %c0_i32_1 = arith.constant 0 : i32
    return %arg0, %c0_i32, %c0_i32_0 : i32, i32, i32
  }
  func.func @transform_2(%arg0: i32, %arg1: i32) -> (i32, i32, i32) {
    %c0_i32 = arith.constant 0 : i32
    %c0_i32_0 = arith.constant 0 : i32
    %c0_i32_1 = arith.constant 0 : i32
    return %arg0, %c0_i32, %c0_i32_0 : i32, i32, i32
  }
  func.func @transform_3(%arg0: i32, %arg1: i32) -> (i32, i32) {
    %c0_i32 = arith.constant 0 : i32
    %c0_i32_0 = arith.constant 0 : i32
    %c0_i32_1 = arith.constant 0 : i32
    return %c0_i32, %c0_i32_0 : i32, i32
  }
  func.func @transform_4(%arg0: i32, %arg1: i32) -> (i32, i32) {
    %c0_i32 = arith.constant 0 : i32
    %c0_i32_0 = arith.constant 0 : i32
    %c0_i32_1 = arith.constant 0 : i32
    return %c0_i32, %c0_i32_0 : i32, i32
  }
  func.func @transform_5(%arg0: i32, %arg1: i32) -> (i32, i32, i32) {
    %c0_i32 = arith.constant 0 : i32
    %c0_i32_0 = arith.constant 0 : i32
    %c0_i32_1 = arith.constant 0 : i32
    return %arg1, %c0_i32, %c0_i32_0 : i32, i32, i32
  }
  func.func @transform_6(%arg0: i32, %arg1: i32) -> (i32, i32, i32) {
    %c0_i32 = arith.constant 0 : i32
    %c0_i32_0 = arith.constant 0 : i32
    %c0_i32_1 = arith.constant 0 : i32
    return %arg1, %c0_i32, %c0_i32_0 : i32, i32, i32
  }
  func.func @transform_7(%arg0: i32, %arg1: i32) -> (i32, i32, i32, i32) {
    %c0_i32 = arith.constant 0 : i32
    %c0_i32_0 = arith.constant 0 : i32
    %c0_i32_1 = arith.constant 0 : i32
    %c0_i32_2 = arith.constant 0 : i32
    return %arg1, %c0_i32, %c0_i32_0, %c0_i32_1 : i32, i32, i32, i32
  }
  func.func @transform_8(%arg0: i32, %arg1: i32) -> (i32, i32, i32) {
    %c0_i32 = arith.constant 0 : i32
    %c0_i32_0 = arith.constant 0 : i32
    %c0_i32_1 = arith.constant 0 : i32
    return %arg1, %c0_i32, %c0_i32_0 : i32, i32, i32
  }
  func.func @transform_9(%arg0: i32, %arg1: i32) -> (i32, i32, i32) {
    %c0_i32 = arith.constant 0 : i32
    %c0_i32_0 = arith.constant 0 : i32
    %c0_i32_1 = arith.constant 0 : i32
    return %arg1, %c0_i32, %c0_i32_0 : i32, i32, i32
  }
  func.func @transform_10(%arg0: i32, %arg1: i32) -> (i32, i32, i32) {
    %c0_i32 = arith.constant 0 : i32
    %c0_i32_0 = arith.constant 0 : i32
    %c0_i32_1 = arith.constant 0 : i32
    return %arg1, %c0_i32, %c0_i32_0 : i32, i32, i32
  }
  func.func @transform_11(%arg0: i32, %arg1: i32) -> (i32, i32, i32) {
    %c0_i32 = arith.constant 0 : i32
    %c0_i32_0 = arith.constant 0 : i32
    %c0_i32_1 = arith.constant 0 : i32
    return %arg1, %c0_i32, %c0_i32_0 : i32, i32, i32
  }
  func.func @transform_12(%arg0: i32, %arg1: i32) -> (i32, i32, i32) {
    %c0_i32 = arith.constant 0 : i32
    %c0_i32_0 = arith.constant 0 : i32
    %c0_i32_1 = arith.constant 0 : i32
    return %arg1, %c0_i32, %c0_i32_0 : i32, i32, i32
  }
  func.func @transform_13(%arg0: i32, %arg1: i32) -> (i32, i32, i32) {
    %c0_i32 = arith.constant 0 : i32
    %c0_i32_0 = arith.constant 0 : i32
    %c0_i32_1 = arith.constant 0 : i32
    return %arg1, %c0_i32, %c0_i32_0 : i32, i32, i32
  }
  func.func @transform_14(%arg0: i32, %arg1: i32) -> (i32, i32, i32) {
    %c0_i32 = arith.constant 0 : i32
    %c0_i32_0 = arith.constant 0 : i32
    %c0_i32_1 = arith.constant 0 : i32
    return %arg1, %c0_i32, %c0_i32_0 : i32, i32, i32
  }
  func.func @transform_15(%arg0: i32, %arg1: i32) -> (i32, i32, i32) {
    %c0_i32 = arith.constant 0 : i32
    %c0_i32_0 = arith.constant 0 : i32
    %c0_i32_1 = arith.constant 0 : i32
    return %arg1, %c0_i32, %c0_i32_0 : i32, i32, i32
  }
  func.func @transform_16(%arg0: i32, %arg1: i32) -> (i32, i32, i32) {
    %c0_i32 = arith.constant 0 : i32
    %c0_i32_0 = arith.constant 0 : i32
    %c0_i32_1 = arith.constant 0 : i32
    return %arg1, %c0_i32, %c0_i32_0 : i32, i32, i32
  }
  func.func @transform_17(%arg0: i32, %arg1: i32) -> (i32, i32, i32) {
    %c0_i32 = arith.constant 0 : i32
    %c0_i32_0 = arith.constant 0 : i32
    %c0_i32_1 = arith.constant 0 : i32
    return %arg0, %c0_i32, %c0_i32_0 : i32, i32, i32
  }
}

</mosaic_0001>

<llo_original>
// kernel: tpu_custom_call.1
$region0: #{tpu_custom_call.1}
  #allocation0 [shape = 'u32[]', space=smem, size = 0x4, offset = 0x4, fixed_abs, tag = 'smem constant byte address 0x4 - core index']
  #allocation1 [shape = 'u32[72,128]{1,0:T(1,128)}', space=vmem, size = 0x9000, scoped, tag = 'internal scratch']
  #allocation2 [shape = 'f32[8,32]{1,0:T(8,128)}', space=vmem, size = 0x1000, scoped, tag = 'scratch operand']
  %s0 = inlined_call_operand.hbm [shape: f32[2,8,32], index: 0, kind: input, shape index: {}]
  %s1 = inlined_call_operand.hbm [shape: f32[2,1,8], index: 1, kind: input, shape index: {}]
  %s2 = inlined_call_operand.hbm [shape: f32[2,1,8], index: 2, kind: input, shape index: {}]
  %s3 = inlined_call_operand.vmem [shape: f32[1,32], index: 3, kind: input, shape index: {}]
  %s4 = inlined_call_operand.hbm [shape: f32[1,32], index: 4, kind: input, shape index: {}]
  %s5 = inlined_call_operand.vmem [shape: bf16[2,32,96], index: 5, kind: input, shape index: {}]
  %s6 = inlined_call_operand.vmem [shape: f32[2,1,96], index: 6, kind: input, shape index: {}]
  %s7 = inlined_call_operand.vmem [shape: bf16[2,4,8,32], index: 7, kind: input, shape index: {}]
  %s8 = inlined_call_operand.vmem [shape: f32[2,1,32], index: 8, kind: input, shape index: {}]
  %s9 = inlined_call_operand.vmem [shape: f32[2,1,32], index: 9, kind: input, shape index: {}]
  %s10 = inlined_call_operand.vmem [shape: f32[2,1,32], index: 10, kind: input, shape index: {}]
  %s11 = inlined_call_operand.vmem [shape: bf16[2,32,64], index: 11, kind: input, shape index: {}]
  %s12 = inlined_call_operand.vmem [shape: f32[2,1,64], index: 12, kind: input, shape index: {}]
  %s13 = inlined_call_operand.vmem [shape: bf16[2,64,32], index: 13, kind: input, shape index: {}]
  %s14 = inlined_call_operand.vmem [shape: f32[2,1,32], index: 14, kind: input, shape index: {}]
  %s15 = inlined_call_operand.hbm [shape: f32[2,1,32], index: 15, kind: input, shape index: {}]
  %s16 = inlined_call_operand.vmem [shape: f32[2,1,32], index: 16, kind: input, shape index: {}]
  %s17 = inlined_call_operand.hbm [shape: f32[2,1,32], index: 17, kind: output, shape index: {}]
  %s18 = sld [smem:[#allocation0]]
  $region129: #{tpu_custom_call.1} parent=0
    _
  %s20 = ssub.s32 1, %s18
  %s21 = scalar_select 0, %s20, %s18
  $region1: #{tpu_custom_call.1} parent=0
    #allocation3 [shape = 'u8[8192]{0}', space=vmem, size = 0x2000, scoped, tag = 'input window, operand 0']
    #allocation4 [shape = 's32[2]{0}', space=sflag, size = 0x8, scoped, tag = 'scoped memory for tpu_custom_call.1']
    #allocation5 [shape = 's32[2]{0}', space=sflag, size = 0x8, scoped, tag = 'scoped memory for tpu_custom_call.1']
    #allocation6 [shape = 'u8[1024]{0}', space=vmem, size = 0x400, scoped, tag = 'input window, operand 1']
    #allocation7 [shape = 's32[2]{0}', space=sflag, size = 0x8, scoped, tag = 'scoped memory for tpu_custom_call.1']
    #allocation8 [shape = 'u8[1024]{0}', space=vmem, size = 0x400, scoped, tag = 'input window, operand 2']
    #allocation9 [shape = 'u8[512]{0}', space=vmem, size = 0x400, scoped, tag = 'input window, operand 4, single buffered']
    #allocation10 [shape = 's32[1]{0}', space=sflag, size = 0x4, scoped, tag = 'scoped memory for tpu_custom_call.1']
    #allocation11 [shape = 'u8[1024]{0}', space=vmem, size = 0x400, scoped, tag = 'input window, operand 15']
    #allocation12 [shape = 'u8[1024]{0}', space=vmem, size = 0x400, scoped, tag = 'output window, operand 0']
    %22 = vsyncpa [#allocation4], 0
    %s23 = scalar_lea.sflag [#allocation4], 1
    %24 = vsyncpa %s23, 0
    %25 = vsyncpa [#allocation7], 0
    %s26 = scalar_lea.sflag [#allocation7], 1
    %27 = vsyncpa %s26, 0
    %28 = vsyncpa [#allocation10], 0
    %29 = vsyncpa [#allocation5], 0
    %s30 = scalar_lea.sflag [#allocation5], 1
    %31 = vsyncpa %s30, 0
    loop: start=0, step=1, limit=6
    $region2: #{tpu_custom_call.1} parent=1 // loop_pre_header
      _
    $region3: #{tpu_custom_call.1} parent=1 // loop_header
      %s33 = sphi 0, %s37
      %p34 = scmp.ge.s32.totalorder %s33, 6
      %s40 = sphi 0, %s52
      %s41 = sphi 0, %s48
      %s42 = sphi 0, %s40
      %s43 = sphi 0, %s41
      %s44 = sphi 0, %s42
      %s45 = sphi 0, %s43
      %s55 = sphi 0, %s57
      %s58 = sphi 0, %s55
      %s59 = sphi 0, %s58
      %s75 = sphi 0, %s59
      %s81 = sphi 0, %s83
      %s84 = sphi 0, %s81
      %s85 = sphi 0, %s84
      %s101 = sphi 0, %s85
      %s107 = sphi 0, %s109
      %s110 = sphi 0, %s107
      %s111 = sphi 0, %s110
      %s127 = sphi 0, %s111
      %s131 = sphi 0, %s131
      %s133 = sphi 0, %s131
      %s134 = sphi 0, %s133
      %s148 = sphi 0, %s134
      %s152 = sphi 0, %s152
      %s154 = sphi 0, %s152
      %s155 = sphi 0, %s154
      %s169 = sphi 0, %s155
      %s175 = sphi 0, %s177
      %s178 = sphi 0, %s175
      %s179 = sphi 0, %s178
      %s195 = sphi 0, %s179
      %s201 = sphi 0, %s203
      %s204 = sphi 0, %s201
      %s205 = sphi 0, %s204
      %s221 = sphi 0, %s205
      %s227 = sphi 0, %s229
      %s230 = sphi 0, %s227
      %s231 = sphi 0, %s230
      %s247 = sphi 0, %s231
      %s253 = sphi 0, %s255
      %s256 = sphi 0, %s253
      %s257 = sphi 0, %s256
      %s273 = sphi 0, %s257
      %s279 = sphi 0, %s281
      %s282 = sphi 0, %s279
      %s283 = sphi 0, %s282
      %s299 = sphi 0, %s283
      %s305 = sphi 0, %s307
      %s308 = sphi 0, %s305
      %s309 = sphi 0, %s308
      %s325 = sphi 0, %s309
      %s331 = sphi 0, %s333
      %s334 = sphi 0, %s331
      %s335 = sphi 0, %s334
      %s351 = sphi 0, %s335
      %s357 = sphi 0, %s359
      %s360 = sphi 0, %s357
      %s361 = sphi 0, %s360
      %s377 = sphi 0, %s361
      %s383 = sphi 0, %s385
      %s386 = sphi 0, %s383
      %s387 = sphi 0, %s386
      %s403 = sphi 0, %s387
      %s409 = sphi 0, %s411
      %s412 = sphi 0, %s409
      %s413 = sphi 0, %s412
      %s429 = sphi 0, %s413
      %s435 = sphi 0, %s437
      %s438 = sphi 0, %s435
      %s439 = sphi 0, %s438
      %s455 = sphi 0, %s439
      %s461 = sphi 0, %s463
      %s464 = sphi 0, %s461
      %s465 = sphi 0, %s464
      %s481 = sphi 0, %s465
      %s487 = sphi 0, %s489
      %s490 = sphi 0, %s487
      %s491 = sphi 0, %s490
      %s507 = sphi 0, %s491
    $region4: #{tpu_custom_call.1} parent=1 // loop_header_branch
      %36 = sbr.rel (%p34) target = $region8
    $region5: #{tpu_custom_call.1} parent=1 // loop_body
      %s38 = ssub.s32 %s33, 1
      %s39 = ssub.s32 %s33, 2
      %s46 = sadd.s32 1, %s41
      %p47 = scmp.ge.s32.totalorder %s46, 2
      %s48 = scalar_select %p47, 0, %s46
      %s49 = sadd.s32 1, %s40
      %s50 = scalar_select %p47, %s49, %s40
      %p51 = scmp.ge.s32.totalorder %s50, 2
      %s52 = scalar_select %p51, 0, %s50
      %s53 = ssub.s32 %s40, %s52
      %p54 = scmp.eq.s32.totalorder %s53, 0
      %s56 = sadd.s32 %s55, 1
      %s57 = scalar_select %p54, %s55, %s56
      %p60 = pneg %p54
      %p61 = scmp.eq.s32.totalorder %s33, 3
      %p62 = por %p60, %p61
      %p63 = scmp.ne.s32.totalorder %s55, %s58
      %p64 = scmp.eq.s32.totalorder %s33, 0
      %p65 = por %p63, %p64
      %p66 = scmp.ne.s32.totalorder %s55, %s58
      %p67 = scmp.eq.s32.totalorder %s38, 3
      %p68 = por %p66, %p67
      %p69 = scmp.ne.s32.totalorder %s58, %s59
      %p70 = scmp.eq.s32.totalorder %s38, 0
      %p71 = por %p69, %p70
      %p72 = scmp.ne.s32.totalorder %s58, %s59
      %p73 = scmp.eq.s32.totalorder %s39, 3
      %p74 = por %p72, %p73
      %p76 = scmp.ne.s32.totalorder %s59, %s75
      %p77 = scmp.eq.s32.totalorder %s39, 0
      %p78 = por %p76, %p77
      %s79 = ssub.s32 %s40, %s52
      %p80 = scmp.eq.s32.totalorder %s79, 0
      %s82 = sadd.s32 %s81, 1
      %s83 = scalar_select %p80, %s81, %s82
      %p86 = pneg %p80
      %p87 = scmp.eq.s32.totalorder %s33, 3
      %p88 = por %p86, %p87
      %p89 = scmp.ne.s32.totalorder %s81, %s84
      %p90 = scmp.eq.s32.totalorder %s33, 0
      %p91 = por %p89, %p90
      %p92 = scmp.ne.s32.totalorder %s81, %s84
      %p93 = scmp.eq.s32.totalorder %s38, 3
      %p94 = por %p92, %p93
      %p95 = scmp.ne.s32.totalorder %s84, %s85
      %p96 = scmp.eq.s32.totalorder %s38, 0
      %p97 = por %p95, %p96
      %p98 = scmp.ne.s32.totalorder %s84, %s85
      %p99 = scmp.eq.s32.totalorder %s39, 3
      %p100 = por %p98, %p99
      %p102 = scmp.ne.s32.totalorder %s85, %s101
      %p103 = scmp.eq.s32.totalorder %s39, 0
      %p104 = por %p102, %p103
      %s105 = ssub.s32 %s40, %s52
      %p106 = scmp.eq.s32.totalorder %s105, 0
      %s108 = sadd.s32 %s107, 1
      %s109 = scalar_select %p106, %s107, %s108
      %p112 = pneg %p106
      %p113 = scmp.eq.s32.totalorder %s33, 3
      %p114 = por %p112, %p113
      %p115 = scmp.ne.s32.totalorder %s107, %s110
      %p116 = scmp.eq.s32.totalorder %s33, 0
      %p117 = por %p115, %p116
      %p118 = scmp.ne.s32.totalorder %s107, %s110
      %p119 = scmp.eq.s32.totalorder %s38, 3
      %p120 = por %p118, %p119
      %p121 = scmp.ne.s32.totalorder %s110, %s111
      %p122 = scmp.eq.s32.totalorder %s38, 0
      %p123 = por %p121, %p122
      %p124 = scmp.ne.s32.totalorder %s110, %s111
      %p125 = scmp.eq.s32.totalorder %s39, 3
      %p126 = por %p124, %p125
      %p128 = scmp.ne.s32.totalorder %s111, %s127
      %p129 = scmp.eq.s32.totalorder %s39, 0
      %p130 = por %p128, %p129
      %s132 = sadd.s32 %s131, 1
      %p135 = scmp.eq.s32.totalorder %s33, 3
      %p136 = scmp.ne.s32.totalorder %s131, %s133
      %p137 = scmp.eq.s32.totalorder %s33, 0
      %p138 = por %p136, %p137
      %p139 = scmp.ne.s32.totalorder %s131, %s133
      %p140 = scmp.eq.s32.totalorder %s38, 3
      %p141 = por %p139, %p140
      %p142 = scmp.ne.s32.totalorder %s133, %s134
      %p143 = scmp.eq.s32.totalorder %s38, 0
      %p144 = por %p142, %p143
      %p145 = scmp.ne.s32.totalorder %s133, %s134
      %p146 = scmp.eq.s32.totalorder %s39, 3
      %p147 = por %p145, %p146
      %p149 = scmp.ne.s32.totalorder %s134, %s148
      %p150 = scmp.eq.s32.totalorder %s39, 0
      %p151 = por %p149, %p150
      %s153 = sadd.s32 %s152, 1
      %p156 = scmp.eq.s32.totalorder %s33, 3
      %p157 = scmp.ne.s32.totalorder %s152, %s154
      %p158 = scmp.eq.s32.totalorder %s33, 0
      %p159 = por %p157, %p158
      %p160 = scmp.ne.s32.totalorder %s152, %s154
      %p161 = scmp.eq.s32.totalorder %s38, 3
      %p162 = por %p160, %p161
      %p163 = scmp.ne.s32.totalorder %s154, %s155
      %p164 = scmp.eq.s32.totalorder %s38, 0
      %p165 = por %p163, %p164
      %p166 = scmp.ne.s32.totalorder %s154, %s155
      %p167 = scmp.eq.s32.totalorder %s39, 3
      %p168 = por %p166, %p167
      %p170 = scmp.ne.s32.totalorder %s155, %s169
      %p171 = scmp.eq.s32.totalorder %s39, 0
      %p172 = por %p170, %p171
      %s173 = ssub.s32 %s41, %s48
      %p174 = scmp.eq.s32.totalorder %s173, 0
      %s176 = sadd.s32 %s175, 1
      %s177 = scalar_select %p174, %s175, %s176
      %p180 = pneg %p174
      %p181 = scmp.eq.s32.totalorder %s33, 3
      %p182 = por %p180, %p181
      %p183 = scmp.ne.s32.totalorder %s175, %s178
      %p184 = scmp.eq.s32.totalorder %s33, 0
      %p185 = por %p183, %p184
      %p186 = scmp.ne.s32.totalorder %s175, %s178
      %p187 = scmp.eq.s32.totalorder %s38, 3
      %p188 = por %p186, %p187
      %p189 = scmp.ne.s32.totalorder %s178, %s179
      %p190 = scmp.eq.s32.totalorder %s38, 0
      %p191 = por %p189, %p190
      %p192 = scmp.ne.s32.totalorder %s178, %s179
      %p193 = scmp.eq.s32.totalorder %s39, 3
      %p194 = por %p192, %p193
      %p196 = scmp.ne.s32.totalorder %s179, %s195
      %p197 = scmp.eq.s32.totalorder %s39, 0
      %p198 = por %p196, %p197
      %s199 = ssub.s32 %s41, %s48
      %p200 = scmp.eq.s32.totalorder %s199, 0
      %s202 = sadd.s32 %s201, 1
      %s203 = scalar_select %p200, %s201, %s202
      %p206 = pneg %p200
      %p207 = scmp.eq.s32.totalorder %s33, 3
      %p208 = por %p206, %p207
      %p209 = scmp.ne.s32.totalorder %s201, %s204
      %p210 = scmp.eq.s32.totalorder %s33, 0
      %p211 = por %p209, %p210
      %p212 = scmp.ne.s32.totalorder %s201, %s204
      %p213 = scmp.eq.s32.totalorder %s38, 3
      %p214 = por %p212, %p213
      %p215 = scmp.ne.s32.totalorder %s204, %s205
      %p216 = scmp.eq.s32.totalorder %s38, 0
      %p217 = por %p215, %p216
      %p218 = scmp.ne.s32.totalorder %s204, %s205
      %p219 = scmp.eq.s32.totalorder %s39, 3
      %p220 = por %p218, %p219
      %p222 = scmp.ne.s32.totalorder %s205, %s221
      %p223 = scmp.eq.s32.totalorder %s39, 0
      %p224 = por %p222, %p223
      %s225 = ssub.s32 %s41, %s48
      %p226 = scmp.eq.s32.totalorder %s225, 0
      %s228 = sadd.s32 %s227, 1
      %s229 = scalar_select %p226, %s227, %s228
      %p232 = pneg %p226
      %p233 = scmp.eq.s32.totalorder %s33, 3
      %p234 = por %p232, %p233
      %p235 = scmp.ne.s32.totalorder %s227, %s230
      %p236 = scmp.eq.s32.totalorder %s33, 0
      %p237 = por %p235, %p236
      %p238 = scmp.ne.s32.totalorder %s227, %s230
      %p239 = scmp.eq.s32.totalorder %s38, 3
      %p240 = por %p238, %p239
      %p241 = scmp.ne.s32.totalorder %s230, %s231
      %p242 = scmp.eq.s32.totalorder %s38, 0
      %p243 = por %p241, %p242
      %p244 = scmp.ne.s32.totalorder %s230, %s231
      %p245 = scmp.eq.s32.totalorder %s39, 3
      %p246 = por %p244, %p245
      %p248 = scmp.ne.s32.totalorder %s231, %s247
      %p249 = scmp.eq.s32.totalorder %s39, 0
      %p250 = por %p248, %p249
      %s251 = ssub.s32 %s41, %s48
      %p252 = scmp.eq.s32.totalorder %s251, 0
      %s254 = sadd.s32 %s253, 1
      %s255 = scalar_select %p252, %s253, %s254
      %p258 = pneg %p252
      %p259 = scmp.eq.s32.totalorder %s33, 3
      %p260 = por %p258, %p259
      %p261 = scmp.ne.s32.totalorder %s253, %s256
      %p262 = scmp.eq.s32.totalorder %s33, 0
      %p263 = por %p261, %p262
      %p264 = scmp.ne.s32.totalorder %s253, %s256
      %p265 = scmp.eq.s32.totalorder %s38, 3
      %p266 = por %p264, %p265
      %p267 = scmp.ne.s32.totalorder %s256, %s257
      %p268 = scmp.eq.s32.totalorder %s38, 0
      %p269 = por %p267, %p268
      %p270 = scmp.ne.s32.totalorder %s256, %s257
      %p271 = scmp.eq.s32.totalorder %s39, 3
      %p272 = por %p270, %p271
      %p274 = scmp.ne.s32.totalorder %s257, %s273
      %p275 = scmp.eq.s32.totalorder %s39, 0
      %p276 = por %p274, %p275
      %s277 = ssub.s32 %s41, %s48
      %p278 = scmp.eq.s32.totalorder %s277, 0
      %s280 = sadd.s32 %s279, 1
      %s281 = scalar_select %p278, %s279, %s280
      %p284 = pneg %p278
      %p285 = scmp.eq.s32.totalorder %s33, 3
      %p286 = por %p284, %p285
      %p287 = scmp.ne.s32.totalorder %s279, %s282
      %p288 = scmp.eq.s32.totalorder %s33, 0
      %p289 = por %p287, %p288
      %p290 = scmp.ne.s32.totalorder %s279, %s282
      %p291 = scmp.eq.s32.totalorder %s38, 3
      %p292 = por %p290, %p291
      %p293 = scmp.ne.s32.totalorder %s282, %s283
      %p294 = scmp.eq.s32.totalorder %s38, 0
      %p295 = por %p293, %p294
      %p296 = scmp.ne.s32.totalorder %s282, %s283
      %p297 = scmp.eq.s32.totalorder %s39, 3
      %p298 = por %p296, %p297
      %p300 = scmp.ne.s32.totalorder %s283, %s299
      %p301 = scmp.eq.s32.totalorder %s39, 0
      %p302 = por %p300, %p301
      %s303 = ssub.s32 %s41, %s48
      %p304 = scmp.eq.s32.totalorder %s303, 0
      %s306 = sadd.s32 %s305, 1
      %s307 = scalar_select %p304, %s305, %s306
      %p310 = pneg %p304
      %p311 = scmp.eq.s32.totalorder %s33, 3
      %p312 = por %p310, %p311
      %p313 = scmp.ne.s32.totalorder %s305, %s308
      %p314 = scmp.eq.s32.totalorder %s33, 0
      %p315 = por %p313, %p314
      %p316 = scmp.ne.s32.totalorder %s305, %s308
      %p317 = scmp.eq.s32.totalorder %s38, 3
      %p318 = por %p316, %p317
      %p319 = scmp.ne.s32.totalorder %s308, %s309
      %p320 = scmp.eq.s32.totalorder %s38, 0
      %p321 = por %p319, %p320
      %p322 = scmp.ne.s32.totalorder %s308, %s309
      %p323 = scmp.eq.s32.totalorder %s39, 3
      %p324 = por %p322, %p323
      %p326 = scmp.ne.s32.totalorder %s309, %s325
      %p327 = scmp.eq.s32.totalorder %s39, 0
      %p328 = por %p326, %p327
      %s329 = ssub.s32 %s41, %s48
      %p330 = scmp.eq.s32.totalorder %s329, 0
      %s332 = sadd.s32 %s331, 1
      %s333 = scalar_select %p330, %s331, %s332
      %p336 = pneg %p330
      %p337 = scmp.eq.s32.totalorder %s33, 3
      %p338 = por %p336, %p337
      %p339 = scmp.ne.s32.totalorder %s331, %s334
      %p340 = scmp.eq.s32.totalorder %s33, 0
      %p341 = por %p339, %p340
      %p342 = scmp.ne.s32.totalorder %s331, %s334
      %p343 = scmp.eq.s32.totalorder %s38, 3
      %p344 = por %p342, %p343
      %p345 = scmp.ne.s32.totalorder %s334, %s335
      %p346 = scmp.eq.s32.totalorder %s38, 0
      %p347 = por %p345, %p346
      %p348 = scmp.ne.s32.totalorder %s334, %s335
      %p349 = scmp.eq.s32.totalorder %s39, 3
      %p350 = por %p348, %p349
      %p352 = scmp.ne.s32.totalorder %s335, %s351
      %p353 = scmp.eq.s32.totalorder %s39, 0
      %p354 = por %p352, %p353
      %s355 = ssub.s32 %s41, %s48
      %p356 = scmp.eq.s32.totalorder %s355, 0
      %s358 = sadd.s32 %s357, 1
      %s359 = scalar_select %p356, %s357, %s358
      %p362 = pneg %p356
      %p363 = scmp.eq.s32.totalorder %s33, 3
      %p364 = por %p362, %p363
      %p365 = scmp.ne.s32.totalorder %s357, %s360
      %p366 = scmp.eq.s32.totalorder %s33, 0
      %p367 = por %p365, %p366
      %p368 = scmp.ne.s32.totalorder %s357, %s360
      %p369 = scmp.eq.s32.totalorder %s38, 3
      %p370 = por %p368, %p369
      %p371 = scmp.ne.s32.totalorder %s360, %s361
      %p372 = scmp.eq.s32.totalorder %s38, 0
      %p373 = por %p371, %p372
      %p374 = scmp.ne.s32.totalorder %s360, %s361
      %p375 = scmp.eq.s32.totalorder %s39, 3
      %p376 = por %p374, %p375
      %p378 = scmp.ne.s32.totalorder %s361, %s377
      %p379 = scmp.eq.s32.totalorder %s39, 0
      %p380 = por %p378, %p379
      %s381 = ssub.s32 %s41, %s48
      %p382 = scmp.eq.s32.totalorder %s381, 0
      %s384 = sadd.s32 %s383, 1
      %s385 = scalar_select %p382, %s383, %s384
      %p388 = pneg %p382
      %p389 = scmp.eq.s32.totalorder %s33, 3
      %p390 = por %p388, %p389
      %p391 = scmp.ne.s32.totalorder %s383, %s386
      %p392 = scmp.eq.s32.totalorder %s33, 0
      %p393 = por %p391, %p392
      %p394 = scmp.ne.s32.totalorder %s383, %s386
      %p395 = scmp.eq.s32.totalorder %s38, 3
      %p396 = por %p394, %p395
      %p397 = scmp.ne.s32.totalorder %s386, %s387
      %p398 = scmp.eq.s32.totalorder %s38, 0
      %p399 = por %p397, %p398
      %p400 = scmp.ne.s32.totalorder %s386, %s387
      %p401 = scmp.eq.s32.totalorder %s39, 3
      %p402 = por %p400, %p401
      %p404 = scmp.ne.s32.totalorder %s387, %s403
      %p405 = scmp.eq.s32.totalorder %s39, 0
      %p406 = por %p404, %p405
      %s407 = ssub.s32 %s41, %s48
      %p408 = scmp.eq.s32.totalorder %s407, 0
      %s410 = sadd.s32 %s409, 1
      %s411 = scalar_select %p408, %s409, %s410
      %p414 = pneg %p408
      %p415 = scmp.eq.s32.totalorder %s33, 3
      %p416 = por %p414, %p415
      %p417 = scmp.ne.s32.totalorder %s409, %s412
      %p418 = scmp.eq.s32.totalorder %s33, 0
      %p419 = por %p417, %p418
      %p420 = scmp.ne.s32.totalorder %s409, %s412
      %p421 = scmp.eq.s32.totalorder %s38, 3
      %p422 = por %p420, %p421
      %p423 = scmp.ne.s32.totalorder %s412, %s413
      %p424 = scmp.eq.s32.totalorder %s38, 0
      %p425 = por %p423, %p424
      %p426 = scmp.ne.s32.totalorder %s412, %s413
      %p427 = scmp.eq.s32.totalorder %s39, 3
      %p428 = por %p426, %p427
      %p430 = scmp.ne.s32.totalorder %s413, %s429
      %p431 = scmp.eq.s32.totalorder %s39, 0
      %p432 = por %p430, %p431
      %s433 = ssub.s32 %s41, %s48
      %p434 = scmp.eq.s32.totalorder %s433, 0
      %s436 = sadd.s32 %s435, 1
      %s437 = scalar_select %p434, %s435, %s436
      %p440 = pneg %p434
      %p441 = scmp.eq.s32.totalorder %s33, 3
      %p442 = por %p440, %p441
      %p443 = scmp.ne.s32.totalorder %s435, %s438
      %p444 = scmp.eq.s32.totalorder %s33, 0
      %p445 = por %p443, %p444
      %p446 = scmp.ne.s32.totalorder %s435, %s438
      %p447 = scmp.eq.s32.totalorder %s38, 3
      %p448 = por %p446, %p447
      %p449 = scmp.ne.s32.totalorder %s438, %s439
      %p450 = scmp.eq.s32.totalorder %s38, 0
      %p451 = por %p449, %p450
      %p452 = scmp.ne.s32.totalorder %s438, %s439
      %p453 = scmp.eq.s32.totalorder %s39, 3
      %p454 = por %p452, %p453
      %p456 = scmp.ne.s32.totalorder %s439, %s455
      %p457 = scmp.eq.s32.totalorder %s39, 0
      %p458 = por %p456, %p457
      %s459 = ssub.s32 %s41, %s48
      %p460 = scmp.eq.s32.totalorder %s459, 0
      %s462 = sadd.s32 %s461, 1
      %s463 = scalar_select %p460, %s461, %s462
      %p466 = pneg %p460
      %p467 = scmp.eq.s32.totalorder %s33, 3
      %p468 = por %p466, %p467
      %p469 = scmp.ne.s32.totalorder %s461, %s464
      %p470 = scmp.eq.s32.totalorder %s33, 0
      %p471 = por %p469, %p470
      %p472 = scmp.ne.s32.totalorder %s461, %s464
      %p473 = scmp.eq.s32.totalorder %s38, 3
      %p474 = por %p472, %p473
      %p475 = scmp.ne.s32.totalorder %s464, %s465
      %p476 = scmp.eq.s32.totalorder %s38, 0
      %p477 = por %p475, %p476
      %p478 = scmp.ne.s32.totalorder %s464, %s465
      %p479 = scmp.eq.s32.totalorder %s39, 3
      %p480 = por %p478, %p479
      %p482 = scmp.ne.s32.totalorder %s465, %s481
      %p483 = scmp.eq.s32.totalorder %s39, 0
      %p484 = por %p482, %p483
      %s485 = ssub.s32 %s40, %s52
      %p486 = scmp.eq.s32.totalorder %s485, 0
      %s488 = sadd.s32 %s487, 1
      %s489 = scalar_select %p486, %s487, %s488
      %p492 = pneg %p486
      %p493 = scmp.eq.s32.totalorder %s33, 3
      %p494 = por %p492, %p493
      %p495 = scmp.ne.s32.totalorder %s487, %s490
      %p496 = scmp.eq.s32.totalorder %s33, 0
      %p497 = por %p495, %p496
      %p498 = scmp.ne.s32.totalorder %s487, %s490
      %p499 = scmp.eq.s32.totalorder %s38, 3
      %p500 = por %p498, %p499
      %p501 = scmp.ne.s32.totalorder %s490, %s491
      %p502 = scmp.eq.s32.totalorder %s38, 0
      %p503 = por %p501, %p502
      %p504 = scmp.ne.s32.totalorder %s490, %s491
      %p505 = scmp.eq.s32.totalorder %s39, 3
      %p506 = por %p504, %p505
      %p508 = scmp.ne.s32.totalorder %s491, %s507
      %p509 = scmp.eq.s32.totalorder %s39, 0
      %p510 = por %p508, %p509
      %p511 = scmp.le.s32.totalorder 1, %s33
      %p512 = scmp.lt.s32.totalorder %s33, 5
      %p513 = pnand %p511, %p512
      %p514 = pneg %p513
      // Predicated region
      $region9: #{tpu_custom_call.1} parent=5 // pred_check
        _
      $region10: #{tpu_custom_call.1} parent=5 // pred_check_branch
        %516 = sbr.rel (%p513) target = $region12
      $region11: #{tpu_custom_call.1} parent=5 // pred_region
        %s517 = ssub.s32 %s33, 1
        // Predicated region
        $region13: #{tpu_custom_call.1} parent=11 // pred_check
          %p518 = pneg %p144
        $region14: #{tpu_custom_call.1} parent=11 // pred_check_branch
          %520 = sbr.rel (%p518) target = $region16
        $region15: #{tpu_custom_call.1} parent=11 // pred_region
          _
        $region16: #{tpu_custom_call.1} parent=11 // pred_fallthru
          _
        // Predicated region
        $region17: #{tpu_custom_call.1} parent=11 // pred_check
          %p521 = pneg %p165
        $region18: #{tpu_custom_call.1} parent=11 // pred_check_branch
          %523 = sbr.rel (%p521) target = $region20
        $region19: #{tpu_custom_call.1} parent=11 // pred_region
          %525 = vsyncadd [#allocation10], 0
          %s527 = sshll.u32 %s4, 4
          %s528 = int_to_ptr.hbm [resolvable:$true] %s527
          %s529 = sshll.u32 [#allocation9], 4
          %s530 = int_to_ptr.vmem [resolvable:$true] %s529
          %532 = dma.hbm_to_vmem [thread:$0]  %s528, 16, %s530, [#allocation10]
        $region20: #{tpu_custom_call.1} parent=11 // pred_fallthru
          _
      $region12: #{tpu_custom_call.1} parent=5 // pred_fallthru
        _
      %p533 = scmp.lt.s32.totalorder %s33, 4
      // Predicated region
      $region21: #{tpu_custom_call.1} parent=5 // pred_check
        %p534 = pneg %p533
      $region22: #{tpu_custom_call.1} parent=5 // pred_check_branch
        %536 = sbr.rel (%p534) target = $region24
      $region23: #{tpu_custom_call.1} parent=5 // pred_region
        // Predicated region
        $region25: #{tpu_custom_call.1} parent=23 // pred_check
          %p537 = pneg %p65
        $region26: #{tpu_custom_call.1} parent=23 // pred_check_branch
          %539 = sbr.rel (%p537) target = $region28
        $region27: #{tpu_custom_call.1} parent=23 // pred_region
          %s540 = sand.u32 %s33, 1
          %s541 = scalar_lea.sflag [#allocation4], %s540
          %s542 = sand.u32 %s55, 1
          %s543 = smul.addr %s542, 8
          %s544 = scalar_lea.vmem [#allocation3], %s543
          %546 = vsyncadd %s541, 0
          %s547 = smul.addr %s40, 8
          %s548 = scalar_lea.hbm %s0, %s547
          %s550 = sshll.u32 %s548, 4
          %s551 = int_to_ptr.hbm [resolvable:$true] %s550
          %s552 = sshll.u32 %s544, 4
          %s553 = int_to_ptr.vmem [resolvable:$true] %s552
          %555 = dma.hbm_to_vmem [thread:$0]  %s551, 128, %s553, %s541
        $region28: #{tpu_custom_call.1} parent=23 // pred_fallthru
          _
        // Predicated region
        $region29: #{tpu_custom_call.1} parent=23 // pred_check
          %p556 = pneg %p91
        $region30: #{tpu_custom_call.1} parent=23 // pred_check_branch
          %558 = sbr.rel (%p556) target = $region32
        $region31: #{tpu_custom_call.1} parent=23 // pred_region
          %s559 = sand.u32 %s33, 1
          %s560 = scalar_lea.sflag [#allocation7], %s559
          %s561 = sand.u32 %s81, 1
          %s562 = scalar_lea.vmem [#allocation6], %s561
          %564 = vsyncadd %s560, 0
          %s565 = scalar_lea.hbm %s1, %s40
          %s567 = sshll.u32 %s565, 4
          %s568 = int_to_ptr.hbm [resolvable:$true] %s567
          %s569 = sshll.u32 %s562, 4
          %s570 = int_to_ptr.vmem [resolvable:$true] %s569
          %572 = dma.hbm_to_vmem [thread:$0]  %s568, 16, %s570, %s560
        $region32: #{tpu_custom_call.1} parent=23 // pred_fallthru
          _
        // Predicated region
        $region33: #{tpu_custom_call.1} parent=23 // pred_check
          %p573 = pneg %p117
        $region34: #{tpu_custom_call.1} parent=23 // pred_check_branch
          %575 = sbr.rel (%p573) target = $region36
        $region35: #{tpu_custom_call.1} parent=23 // pred_region
          %s576 = sand.u32 %s33, 1
          %s577 = scalar_lea.sflag [#allocation7], %s576
          %s578 = sand.u32 %s107, 1
          %s579 = scalar_lea.vmem [#allocation8], %s578
          %581 = vsyncadd %s577, 0
          %s582 = scalar_lea.hbm %s2, %s40
          %s584 = sshll.u32 %s582, 4
          %s585 = int_to_ptr.hbm [resolvable:$true] %s584
          %s586 = sshll.u32 %s579, 4
          %s587 = int_to_ptr.vmem [resolvable:$true] %s586
          %589 = dma.hbm_to_vmem [thread:$0]  %s585, 16, %s587, %s577
        $region36: #{tpu_custom_call.1} parent=23 // pred_fallthru
          _
        // Predicated region
        $region37: #{tpu_custom_call.1} parent=23 // pred_check
          %p590 = pneg %p185
        $region38: #{tpu_custom_call.1} parent=23 // pred_check_branch
          %592 = sbr.rel (%p590) target = $region40
        $region39: #{tpu_custom_call.1} parent=23 // pred_region
          %p593 = scmp.lt.s32.totalorder %s41, 1
          %s594 = scalar_select %p593, %s41, 1
          %s595 = smul.addr %s594, 4
          %s596 = smul.addr %s595, 4
          %s597 = scalar_lea.vmem %s5, %s596
        $region40: #{tpu_custom_call.1} parent=23 // pred_fallthru
          _
        // Predicated region
        $region41: #{tpu_custom_call.1} parent=23 // pred_check
          %p598 = pneg %p211
        $region42: #{tpu_custom_call.1} parent=23 // pred_check_branch
          %600 = sbr.rel (%p598) target = $region44
        $region43: #{tpu_custom_call.1} parent=23 // pred_region
          %p601 = scmp.lt.s32.totalorder %s41, 1
          %s602 = scalar_select %p601, %s41, 1
          %s603 = scalar_lea.vmem %s6, %s602
        $region44: #{tpu_custom_call.1} parent=23 // pred_fallthru
          _
        // Predicated region
        $region45: #{tpu_custom_call.1} parent=23 // pred_check
          %p604 = pneg %p237
        $region46: #{tpu_custom_call.1} parent=23 // pred_check_branch
          %606 = sbr.rel (%p604) target = $region48
        $region47: #{tpu_custom_call.1} parent=23 // pred_region
          %p607 = scmp.lt.s32.totalorder %s41, 1
          %s608 = scalar_select %p607, %s41, 1
          %s609 = smul.addr %s608, 4
          %s610 = smul.addr %s609, 4
          %s611 = scalar_lea.vmem %s7, %s610
        $region48: #{tpu_custom_call.1} parent=23 // pred_fallthru
          _
        // Predicated region
        $region49: #{tpu_custom_call.1} parent=23 // pred_check
          %p612 = pneg %p263
        $region50: #{tpu_custom_call.1} parent=23 // pred_check_branch
          %614 = sbr.rel (%p612) target = $region52
        $region51: #{tpu_custom_call.1} parent=23 // pred_region
          %p615 = scmp.lt.s32.totalorder %s41, 1
          %s616 = scalar_select %p615, %s41, 1
          %s617 = scalar_lea.vmem %s8, %s616
        $region52: #{tpu_custom_call.1} parent=23 // pred_fallthru
          _
        // Predicated region
        $region53: #{tpu_custom_call.1} parent=23 // pred_check
          %p618 = pneg %p289
        $region54: #{tpu_custom_call.1} parent=23 // pred_check_branch
          %620 = sbr.rel (%p618) target = $region56
        $region55: #{tpu_custom_call.1} parent=23 // pred_region
          %p621 = scmp.lt.s32.totalorder %s41, 1
          %s622 = scalar_select %p621, %s41, 1
          %s623 = scalar_lea.vmem %s9, %s622
        $region56: #{tpu_custom_call.1} parent=23 // pred_fallthru
          _
        // Predicated region
        $region57: #{tpu_custom_call.1} parent=23 // pred_check
          %p624 = pneg %p315
        $region58: #{tpu_custom_call.1} parent=23 // pred_check_branch
          %626 = sbr.rel (%p624) target = $region60
        $region59: #{tpu_custom_call.1} parent=23 // pred_region
          %p627 = scmp.lt.s32.totalorder %s41, 1
          %s628 = scalar_select %p627, %s41, 1
          %s629 = scalar_lea.vmem %s10, %s628
        $region60: #{tpu_custom_call.1} parent=23 // pred_fallthru
          _
        // Predicated region
        $region61: #{tpu_custom_call.1} parent=23 // pred_check
          %p630 = pneg %p341
        $region62: #{tpu_custom_call.1} parent=23 // pred_check_branch
          %632 = sbr.rel (%p630) target = $region64
        $region63: #{tpu_custom_call.1} parent=23 // pred_region
          %p633 = scmp.lt.s32.totalorder %s41, 1
          %s634 = scalar_select %p633, %s41, 1
          %s635 = smul.addr %s634, 4
          %s636 = smul.addr %s635, 4
          %s637 = scalar_lea.vmem %s11, %s636
        $region64: #{tpu_custom_call.1} parent=23 // pred_fallthru
          _
        // Predicated region
        $region65: #{tpu_custom_call.1} parent=23 // pred_check
          %p638 = pneg %p367
        $region66: #{tpu_custom_call.1} parent=23 // pred_check_branch
          %640 = sbr.rel (%p638) target = $region68
        $region67: #{tpu_custom_call.1} parent=23 // pred_region
          %p641 = scmp.lt.s32.totalorder %s41, 1
          %s642 = scalar_select %p641, %s41, 1
          %s643 = scalar_lea.vmem %s12, %s642
        $region68: #{tpu_custom_call.1} parent=23 // pred_fallthru
          _
        // Predicated region
        $region69: #{tpu_custom_call.1} parent=23 // pred_check
          %p644 = pneg %p393
        $region70: #{tpu_custom_call.1} parent=23 // pred_check_branch
          %646 = sbr.rel (%p644) target = $region72
        $region71: #{tpu_custom_call.1} parent=23 // pred_region
          %p647 = scmp.lt.s32.totalorder %s41, 1
          %s648 = scalar_select %p647, %s41, 1
          %s649 = smul.addr %s648, 8
          %s650 = smul.addr %s649, 4
          %s651 = scalar_lea.vmem %s13, %s650
        $region72: #{tpu_custom_call.1} parent=23 // pred_fallthru
          _
        // Predicated region
        $region73: #{tpu_custom_call.1} parent=23 // pred_check
          %p652 = pneg %p419
        $region74: #{tpu_custom_call.1} parent=23 // pred_check_branch
          %654 = sbr.rel (%p652) target = $region76
        $region75: #{tpu_custom_call.1} parent=23 // pred_region
          %p655 = scmp.lt.s32.totalorder %s41, 1
          %s656 = scalar_select %p655, %s41, 1
          %s657 = scalar_lea.vmem %s14, %s656
        $region76: #{tpu_custom_call.1} parent=23 // pred_fallthru
          _
        // Predicated region
        $region77: #{tpu_custom_call.1} parent=23 // pred_check
          %p658 = pneg %p445
        $region78: #{tpu_custom_call.1} parent=23 // pred_check_branch
          %660 = sbr.rel (%p658) target = $region80
        $region79: #{tpu_custom_call.1} parent=23 // pred_region
          %s661 = sand.u32 %s33, 1
          %s662 = scalar_lea.sflag [#allocation4], %s661
          %s663 = sand.u32 %s435, 1
          %s664 = scalar_lea.vmem [#allocation11], %s663
          %666 = vsyncadd %s662, 0
          %s667 = scalar_lea.hbm %s15, %s41
          %s669 = sshll.u32 %s667, 4
          %s670 = int_to_ptr.hbm [resolvable:$true] %s669
          %s671 = sshll.u32 %s664, 4
          %s672 = int_to_ptr.vmem [resolvable:$true] %s671
          %674 = dma.hbm_to_vmem [thread:$0]  %s670, 16, %s672, %s662
        $region80: #{tpu_custom_call.1} parent=23 // pred_fallthru
          _
        // Predicated region
        $region81: #{tpu_custom_call.1} parent=23 // pred_check
          %p675 = pneg %p471
        $region82: #{tpu_custom_call.1} parent=23 // pred_check_branch
          %677 = sbr.rel (%p675) target = $region84
        $region83: #{tpu_custom_call.1} parent=23 // pred_region
          %p678 = scmp.lt.s32.totalorder %s41, 1
          %s679 = scalar_select %p678, %s41, 1
          %s680 = scalar_lea.vmem %s16, %s679
        $region84: #{tpu_custom_call.1} parent=23 // pred_fallthru
          _
      $region24: #{tpu_custom_call.1} parent=5 // pred_fallthru
        _
      %p681 = scmp.le.s32.totalorder 1, %s33
      %p682 = scmp.lt.s32.totalorder %s33, 5
      %p683 = pnand %p681, %p682
      %p684 = pneg %p683
      // Predicated region
      $region85: #{tpu_custom_call.1} parent=5 // pred_check
        _
      $region86: #{tpu_custom_call.1} parent=5 // pred_check_branch
        %686 = sbr.rel (%p683) target = $region88
      $region87: #{tpu_custom_call.1} parent=5 // pred_region
        %s687 = ssub.s32 %s33, 1
        %s688 = sand.u32 %s38, 1
        %s689 = scalar_lea.sflag [#allocation4], %s688
        %s690 = sand.u32 %s58, 1
        %s691 = smul.addr %s690, 8
        %s692 = scalar_lea.vmem [#allocation3], %s691
        // Predicated region
        $region89: #{tpu_custom_call.1} parent=87 // pred_check
          %p693 = pneg %p71
        $region90: #{tpu_custom_call.1} parent=87 // pred_check_branch
          %695 = sbr.rel (%p693) target = $region92
        $region91: #{tpu_custom_call.1} parent=87 // pred_region
          %697 = dma.done %s689, 128
        $region92: #{tpu_custom_call.1} parent=87 // pred_fallthru
          _
        %s698 = sand.u32 %s38, 1
        %s699 = scalar_lea.sflag [#allocation7], %s698
        %s700 = sand.u32 %s84, 1
        %s701 = scalar_lea.vmem [#allocation6], %s700
        // Predicated region
        $region93: #{tpu_custom_call.1} parent=87 // pred_check
          %p702 = pneg %p97
        $region94: #{tpu_custom_call.1} parent=87 // pred_check_branch
          %704 = sbr.rel (%p702) target = $region96
        $region95: #{tpu_custom_call.1} parent=87 // pred_region
          %706 = dma.done %s699, 16
        $region96: #{tpu_custom_call.1} parent=87 // pred_fallthru
          _
        %s707 = sand.u32 %s38, 1
        %s708 = scalar_lea.sflag [#allocation7], %s707
        %s709 = sand.u32 %s110, 1
        %s710 = scalar_lea.vmem [#allocation8], %s709
        // Predicated region
        $region97: #{tpu_custom_call.1} parent=87 // pred_check
          %p711 = pneg %p123
        $region98: #{tpu_custom_call.1} parent=87 // pred_check_branch
          %713 = sbr.rel (%p711) target = $region100
        $region99: #{tpu_custom_call.1} parent=87 // pred_region
          %715 = dma.done %s708, 16
        $region100: #{tpu_custom_call.1} parent=87 // pred_fallthru
          _
        // Predicated region
        $region101: #{tpu_custom_call.1} parent=87 // pred_check
          %p716 = pneg %p165
        $region102: #{tpu_custom_call.1} parent=87 // pred_check_branch
          %718 = sbr.rel (%p716) target = $region104
        $region103: #{tpu_custom_call.1} parent=87 // pred_region
          %720 = dma.done [#allocation10], 16
        $region104: #{tpu_custom_call.1} parent=87 // pred_fallthru
          _
        %s721 = sand.u32 %s38, 1
        %s722 = scalar_lea.sflag [#allocation4], %s721
        %s723 = sand.u32 %s438, 1
        %s724 = scalar_lea.vmem [#allocation11], %s723
        // Predicated region
        $region105: #{tpu_custom_call.1} parent=87 // pred_check
          %p725 = pneg %p451
        $region106: #{tpu_custom_call.1} parent=87 // pred_check_branch
          %727 = sbr.rel (%p725) target = $region108
        $region107: #{tpu_custom_call.1} parent=87 // pred_region
          %729 = dma.done %s722, 16
        $region108: #{tpu_custom_call.1} parent=87 // pred_fallthru
          _
        %s730 = sand.u32 %s38, 1
        %s731 = scalar_lea.sflag [#allocation4], %s730
        %s732 = sand.u32 %s58, 1
        %s733 = smul.addr %s732, 8
        %s734 = scalar_lea.vmem [#allocation3], %s733
        %p735 = pneg %p71
        %p736 = pneg %p68
        %s737 = sand.u32 %s38, 1
        %s738 = scalar_lea.sflag [#allocation7], %s737
        %s739 = sand.u32 %s84, 1
        %s740 = scalar_lea.vmem [#allocation6], %s739
        %p741 = pneg %p97
        %p742 = pneg %p94
        %s743 = sand.u32 %s38, 1
        %s744 = scalar_lea.sflag [#allocation7], %s743
        %s745 = sand.u32 %s110, 1
        %s746 = scalar_lea.vmem [#allocation8], %s745
        %p747 = pneg %p123
        %p748 = pneg %p120
        %p749 = pneg %p144
        %p750 = pneg %p141
        %p751 = pneg %p165
        %p752 = pneg %p162
        %p753 = scmp.lt.s32.totalorder %s43, 1
        %s754 = scalar_select %p753, %s43, 1
        %s755 = smul.addr %s754, 4
        %s756 = smul.addr %s755, 4
        %s757 = scalar_lea.vmem %s5, %s756
        %p758 = pneg %p191
        %p759 = pneg %p188
        %p760 = scmp.lt.s32.totalorder %s43, 1
        %s761 = scalar_select %p760, %s43, 1
        %s762 = scalar_lea.vmem %s6, %s761
        %p763 = pneg %p217
        %p764 = pneg %p214
        %p765 = scmp.lt.s32.totalorder %s43, 1
        %s766 = scalar_select %p765, %s43, 1
        %s767 = smul.addr %s766, 4
        %s768 = smul.addr %s767, 4
        %s769 = scalar_lea.vmem %s7, %s768
        %p770 = pneg %p243
        %p771 = pneg %p240
        %p772 = scmp.lt.s32.totalorder %s43, 1
        %s773 = scalar_select %p772, %s43, 1
        %s774 = scalar_lea.vmem %s8, %s773
        %p775 = pneg %p269
        %p776 = pneg %p266
        %p777 = scmp.lt.s32.totalorder %s43, 1
        %s778 = scalar_select %p777, %s43, 1
        %s779 = scalar_lea.vmem %s9, %s778
        %p780 = pneg %p295
        %p781 = pneg %p292
        %p782 = scmp.lt.s32.totalorder %s43, 1
        %s783 = scalar_select %p782, %s43, 1
        %s784 = scalar_lea.vmem %s10, %s783
        %p785 = pneg %p321
        %p786 = pneg %p318
        %p787 = scmp.lt.s32.totalorder %s43, 1
        %s788 = scalar_select %p787, %s43, 1
        %s789 = smul.addr %s788, 4
        %s790 = smul.addr %s789, 4
        %s791 = scalar_lea.vmem %s11, %s790
        %p792 = pneg %p347
        %p793 = pneg %p344
        %p794 = scmp.lt.s32.totalorder %s43, 1
        %s795 = scalar_select %p794, %s43, 1
        %s796 = scalar_lea.vmem %s12, %s795
        %p797 = pneg %p373
        %p798 = pneg %p370
        %p799 = scmp.lt.s32.totalorder %s43, 1
        %s800 = scalar_select %p799, %s43, 1
        %s801 = smul.addr %s800, 8
        %s802 = smul.addr %s801, 4
        %s803 = scalar_lea.vmem %s13, %s802
        %p804 = pneg %p399
        %p805 = pneg %p396
        %p806 = scmp.lt.s32.totalorder %s43, 1
        %s807 = scalar_select %p806, %s43, 1
        %s808 = scalar_lea.vmem %s14, %s807
        %p809 = pneg %p425
        %p810 = pneg %p422
        %s811 = sand.u32 %s38, 1
        %s812 = scalar_lea.sflag [#allocation4], %s811
        %s813 = sand.u32 %s438, 1
        %s814 = scalar_lea.vmem [#allocation11], %s813
        %p815 = pneg %p451
        %p816 = pneg %p448
        %p817 = scmp.lt.s32.totalorder %s43, 1
        %s818 = scalar_select %p817, %s43, 1
        %s819 = scalar_lea.vmem %s16, %s818
        %p820 = pneg %p477
        %p821 = pneg %p474
        %p822 = pneg %p503
        %p823 = pneg %p500
        %s824 = sand.u32 %s490, 1
        %s825 = scalar_lea.sflag [#allocation5], %s824
        %s826 = sand.u32 %s490, 1
        %s827 = scalar_lea.vmem [#allocation12], %s826
        %p828 = scmp.lt.s32.totalorder %s43, 1
        %s829 = scalar_select %p828, %s43, 1
        %s830 = smul.addr %s829, 4
        %s831 = smul.addr %s830, 4
        %s832 = scalar_lea.vmem %s5, %s831
        %p833 = scmp.lt.s32.totalorder %s43, 1
        %s834 = scalar_select %p833, %s43, 1
        %s835 = scalar_lea.vmem %s6, %s834
        %p836 = scmp.lt.s32.totalorder %s43, 1
        %s837 = scalar_select %p836, %s43, 1
        %s838 = smul.addr %s837, 4
        %s839 = smul.addr %s838, 4
        %s840 = scalar_lea.vmem %s7, %s839
        %p841 = scmp.lt.s32.totalorder %s43, 1
        %s842 = scalar_select %p841, %s43, 1
        %s843 = scalar_lea.vmem %s8, %s842
        %p844 = scmp.lt.s32.totalorder %s43, 1
        %s845 = scalar_select %p844, %s43, 1
        %s846 = scalar_lea.vmem %s9, %s845
        %p847 = scmp.lt.s32.totalorder %s43, 1
        %s848 = scalar_select %p847, %s43, 1
        %s849 = scalar_lea.vmem %s10, %s848
        %p850 = scmp.lt.s32.totalorder %s43, 1
        %s851 = scalar_select %p850, %s43, 1
        %s852 = smul.addr %s851, 4
        %s853 = smul.addr %s852, 4
        %s854 = scalar_lea.vmem %s11, %s853
        %p855 = scmp.lt.s32.totalorder %s43, 1
        %s856 = scalar_select %p855, %s43, 1
        %s857 = scalar_lea.vmem %s12, %s856
        %p858 = scmp.lt.s32.totalorder %s43, 1
        %s859 = scalar_select %p858, %s43, 1
        %s860 = smul.addr %s859, 8
        %s861 = smul.addr %s860, 4
        %s862 = scalar_lea.vmem %s13, %s861
        %p863 = scmp.lt.s32.totalorder %s43, 1
        %s864 = scalar_select %p863, %s43, 1
        %s865 = scalar_lea.vmem %s14, %s864
        %p866 = scmp.lt.s32.totalorder %s43, 1
        %s867 = scalar_select %p866, %s43, 1
        %s868 = scalar_lea.vmem %s16, %s867
        %p870 = scmp.eq.s32.totalorder %s43, 0
        // Predicated region
        $region109: #{tpu_custom_call.1} parent=87 // pred_check
          %p871 = pneg %p870
        $region110: #{tpu_custom_call.1} parent=87 // pred_check_branch
          %873 = sbr.rel (%p871) target = $region112
        $region111: #{tpu_custom_call.1} parent=87 // pred_region
          %v874 = vld [vmem:[%s692] sm:$0xff]
          %v875 = vld [vmem:[%s3] sm:$0x1]
          %v876 = vld [vmem:[#allocation9] sm:$0x1]
          %vm877 = vcmask 261120
          %v878 = vsel %vm877, %v874, 0.0
          %879 = vadd.xlane.f32.xlu0 %v878
          %v880 = vpop.xlane.xlu0 %879
          %v881 = vrcp.pop 32.0
          %v882 = vmul.f32 32.0, %v881
          %v883 = vsub.f32 1.0, %v882
          %v884 = vmul.f32 %v881, %v883
          %v885 = vadd.f32 %v881, %v884
          %vm886 = vweird.f32 %v881
          %v887 = vsel %vm886, %v881, %v885
          %v888 = vmul.f32 %v880, %v887
          %v889 = vsub.f32 %v874, %v888
          %v890 = vmul.f32 %v889, %v889
          %v891 = vsel %vm877, %v890, 0.0
          %892 = vadd.xlane.f32.xlu0 %v891
          %v893 = vpop.xlane.xlu0 %892
          %v894 = vmul.f32 %v893, %v887
          %v895 = vadd.f32 %v894, 1e-12
          %v896 = vrsqrt.pop %v895
          %v897 = vmul.f32 %v896, %v895
          %v898 = vmul.f32 %v897, %v896
          %v899 = vmul.f32 0.5, %v898
          %v900 = vsub.f32 1.5, %v899
          %v901 = vmul.f32 %v896, %v900
          %vm902 = vweird.f32 %v895
          %vm903 = vweird.f32 %v896
          %vm904 = vmor %vm902, %vm903
          %v905 = vsel %vm904, %v896, %v901
          %v906 = vmul.f32 %v889, %v905
          %v908 = vperm.slane %v875, 0
          %v910 = vmul.f32 %v906, %v908
          %v912 = vperm.slane %v876, 0
          %v914 = vadd.f32 %v910, %v912
          %915 = vst.msk [vmem:[#allocation2] sm:$0xff] %vm877, %v914
        $region112: #{tpu_custom_call.1} parent=87 // pred_fallthru
          _
        %v916 = vld [vmem:[#allocation2] sm:$0xff]
        %v917 = vld [vmem:[%s701] sm:$0x1]
        %v918 = vld [vmem:[%s832] sm:$0xf]
        %v919 = vld [vmem:[%s832 + $0x4] sm:$0xf]
        %v920 = vld [vmem:[%s832 + $0x8] sm:$0xf]
        %v921 = vld [vmem:[%s832 + $0xc] sm:$0xf]
        %v922 = vpack.c.bf16 %v916, %v916
        %v923 = vld [vmem:[%s835] sm:$0x1]
        %v925 = vperm.slane %v923, 0
        %v931 = vunpack.c.l.b16 %v918
        %v932 = vunpack.c.l.b16 %v919
        %v933 = vunpack.c.l.b16 %v920
        %v934 = vunpack.c.l.b16 %v921
        %v935 = vpack.c.b16 %v932, %v931
        %v936 = vpack.c.b16 %v934, %v933
        %vm939 = vcmask 261120
        %v941 = vsel %vm939, %v922, 0
        %943 = vmatpush.bf16.msra.mxu0 0
        %944 = vmatpush.bf16.msra.mxu0 0
        %945 = vmatpush.bf16.msra.mxu0 0
        %946 = vmatpush.bf16.msra.mxu0 0
        %947 = vmatpush.bf16.msra.mxu0 0
        %948 = vmatpush.bf16.msra.mxu0 0
        %949 = vmatpush.bf16.msra.mxu0 %v936
        %950 = vmatpush.bf16.msra.mxu0 %v935
        %951 = vmatmul.bf16.gmra.mxu0 %v941
        %v952 = vpop.f32.mrf.mxu0
        %v953 = vadd.f32 %v925, %v952
        %v954 = vpop.f32.mrf.mxu0
        %955 = vdwg.mxu0
        %v956 = vld [vmem:[%s840] sm:$0xf]
        %v957 = vld [vmem:[%s840 + $0x4] sm:$0xf]
        %v958 = vld [vmem:[%s840 + $0x8] sm:$0xf]
        %v959 = vld [vmem:[%s840 + $0xc] sm:$0xf]
        %961 = vrot.lane.b32.xlu0 %v953, 96
        %v962 = vpop.permute.xlu0 %961
        %vm963 = vcmask 64512
        %v964 = vsel %vm963, %v953, 0
        %v966 = vsel %vm963, %v962, 0
        %968 = vmatpush.xpose.msra.mxu0 0.0
        %969 = vmatpush.xpose.msra.mxu0 0.0
        %970 = vmatpush.xpose.msra.mxu0 0.0
        %971 = vmatpush.xpose.msra.mxu0 0.0
        %972 = vmatpush.xpose.msra.mxu0 0.0
        %973 = vmatpush.xpose.msra.mxu0 0.0
        %974 = vmatpush.xpose.msra.mxu0 0.0
        %975 = vmatpush.xpose.msra.mxu0 0.0
        %976 = vmatpush.xpose.msra.mxu0 0.0
        %977 = vmatpush.xpose.msra.mxu0 0.0
        %978 = vmatpush.xpose.msra.mxu0 0.0
        %979 = vmatpush.xpose.msra.mxu0 0.0
        %980 = vmatpush.xpose.msra.mxu0 0.0
        %981 = vmatpush.xpose.msra.mxu0 0.0
        %982 = vmatpush.xpose.msra.mxu0 0.0
        %983 = vmatpush.xpose.msra.mxu0 %v966
        %984 = vmatmul.f32.gmra.mxu0 %v964
        %v985 = vpop.f32.mrf.mxu0
        %v986 = vadd.f32 0.0, %v985
        %987 = vdwg.mxu0
        %v988 = vmul.f32 %v986, 0.35355338
        %v990 = vperm.slane %v917, 0
        %v992 = vadd.f32 %v988, %v990
        %v993 = vsel %vm963, %v992, -inf
        %994 = vmax.xlane.f32.xlu0 %v993
        %v995 = vpop.xlane.xlu0 %994
        %v996 = vsub.f32 %v992, %v995
        %v997 = vmul.f32 %v996, 1.442695
        %v998 = vpow.pop %v997
        %v999 = vsel %vm963, %v998, 0.0
        %1000 = vadd.xlane.f32.xlu0 %v999
        %v1001 = vpop.xlane.xlu0 %1000
        %v1002 = vrcp.pop %v1001
        %v1003 = vmul.f32 %v998, %v1002
        %1004 = vrot.lane.b32.xlu0 %v953, 64
        %v1005 = vpop.permute.xlu0 %1004
        %v1008 = vsel %vm963, %v1003, 0
        %1010 = vmatpush.msra.mxu0 0.0
        %1011 = vmatpush.msra.mxu0 0.0
        %1012 = vmatpush.msra.mxu0 0.0
        %1013 = vmatpush.msra.mxu0 0.0
        %1014 = vmatpush.msra.mxu0 0.0
        %1015 = vmatpush.msra.mxu0 0.0
        %1016 = vmatpush.msra.mxu0 0.0
        %1017 = vmatpush.msra.mxu0 0.0
        %1018 = vmatpush.msra.mxu0 0.0
        %1019 = vmatpush.msra.mxu0 0.0
        %1020 = vmatpush.msra.mxu0 0.0
        %1021 = vmatpush.msra.mxu0 0.0
        %1022 = vmatpush.msra.mxu0 0.0
        %1023 = vmatpush.msra.mxu0 0.0
        %1024 = vmatpush.msra.mxu0 0.0
        %1025 = vmatpush.msra.mxu0 %v1005
        %1026 = vmatmul.f32.gmra.mxu0 %v1008
        %v1027 = vpop.f32.mrf.mxu0
        %v1028 = vadd.f32 0.0, %v1027
        %1029 = vdwg.mxu0
        %v1030 = vpack.c.bf16 %v1028, %v1028
        %1031 = vrot.lane.b32.xlu0 %v953, 120
        %v1032 = vpop.permute.xlu0 %1031
        %1033 = vrot.lane.b32.xlu0 %v953, 88
        %v1034 = vpop.permute.xlu0 %1033
        %v1035 = vsel %vm963, %v1032, 0
        %v1037 = vsel %vm963, %v1034, 0
        %1039 = vmatpush.xpose.msra.mxu0 0.0
        %1040 = vmatpush.xpose.msra.mxu0 0.0
        %1041 = vmatpush.xpose.msra.mxu0 0.0
        %1042 = vmatpush.xpose.msra.mxu0 0.0
        %1043 = vmatpush.xpose.msra.mxu0 0.0
        %1044 = vmatpush.xpose.msra.mxu0 0.0
        %1045 = vmatpush.xpose.msra.mxu0 0.0
        %1046 = vmatpush.xpose.msra.mxu0 0.0
        %1047 = vmatpush.xpose.msra.mxu0 0.0
        %1048 = vmatpush.xpose.msra.mxu0 0.0
        %1049 = vmatpush.xpose.msra.mxu0 0.0
        %1050 = vmatpush.xpose.msra.mxu0 0.0
        %1051 = vmatpush.xpose.msra.mxu0 0.0
        %1052 = vmatpush.xpose.msra.mxu0 0.0
        %1053 = vmatpush.xpose.msra.mxu0 0.0
        %1054 = vmatpush.xpose.msra.mxu0 %v1037
        %1055 = vmatmul.f32.gmra.mxu0 %v1035
        %v1056 = vpop.f32.mrf.mxu0
        %v1057 = vadd.f32 0.0, %v1056
        %1058 = vdwg.mxu0
        %v1059 = vmul.f32 %v1057, 0.35355338
        %v1060 = vadd.f32 %v1059, %v990
        %v1061 = vsel %vm963, %v1060, -inf
        %1062 = vmax.xlane.f32.xlu0 %v1061
        %v1063 = vpop.xlane.xlu0 %1062
        %v1064 = vsub.f32 %v1060, %v1063
        %v1065 = vmul.f32 %v1064, 1.442695
        %v1066 = vpow.pop %v1065
        %v1067 = vsel %vm963, %v1066, 0.0
        %1068 = vadd.xlane.f32.xlu0 %v1067
        %v1069 = vpop.xlane.xlu0 %1068
        %v1070 = vrcp.pop %v1069
        %v1071 = vmul.f32 %v1066, %v1070
        %1072 = vrot.lane.b32.xlu0 %v953, 56
        %v1073 = vpop.permute.xlu0 %1072
        %v1076 = vsel %vm963, %v1071, 0
        %1078 = vmatpush.msra.mxu0 0.0
        %1079 = vmatpush.msra.mxu0 0.0
        %1080 = vmatpush.msra.mxu0 0.0
        %1081 = vmatpush.msra.mxu0 0.0
        %1082 = vmatpush.msra.mxu0 0.0
        %1083 = vmatpush.msra.mxu0 0.0
        %1084 = vmatpush.msra.mxu0 0.0
        %1085 = vmatpush.msra.mxu0 0.0
        %1086 = vmatpush.msra.mxu0 0.0
        %1087 = vmatpush.msra.mxu0 0.0
        %1088 = vmatpush.msra.mxu0 0.0
        %1089 = vmatpush.msra.mxu0 0.0
        %1090 = vmatpush.msra.mxu0 0.0
        %1091 = vmatpush.msra.mxu0 0.0
        %1092 = vmatpush.msra.mxu0 0.0
        %1093 = vmatpush.msra.mxu0 %v1073
        %1094 = vmatmul.f32.gmra.mxu0 %v1076
        %v1095 = vpop.f32.mrf.mxu0
        %v1096 = vadd.f32 0.0, %v1095
        %1097 = vdwg.mxu0
        %v1098 = vpack.c.bf16 %v1096, %v1096
        %v1100 = vsel %vm963, %v1098, 0
        %vm1102 = vcmask 1043456
        %v1104 = vsel %vm1102, %v957, 0
        %1106 = vmatpush.bf16.msra.mxu0 0
        %1107 = vmatpush.bf16.msra.mxu0 0
        %1108 = vmatpush.bf16.msra.mxu0 0
        %1109 = vmatpush.bf16.msra.mxu0 0
        %1110 = vmatpush.bf16.msra.mxu0 0
        %1111 = vmatpush.bf16.msra.mxu0 0
        %1112 = vmatpush.bf16.msra.mxu0 0
        %1113 = vmatpush.bf16.msra.mxu0 %v1104
        %1114 = vmatmul.bf16.gmra.mxu0 %v1100
        %v1115 = vpop.f32.mrf.mxu0
        %v1116 = vadd.f32 0.0, %v1115
        %v1117 = vpop.f32.mrf.mxu0
        %1118 = vdwg.mxu0
        %v1120 = vsel %vm963, %v1030, 0
        %v1123 = vsel %vm1102, %v956, 0
        %1125 = vmatpush.bf16.msra.mxu0 0
        %1126 = vmatpush.bf16.msra.mxu0 0
        %1127 = vmatpush.bf16.msra.mxu0 0
        %1128 = vmatpush.bf16.msra.mxu0 0
        %1129 = vmatpush.bf16.msra.mxu0 0
        %1130 = vmatpush.bf16.msra.mxu0 0
        %1131 = vmatpush.bf16.msra.mxu0 0
        %1132 = vmatpush.bf16.msra.mxu0 %v1123
        %1133 = vmatmul.bf16.gmra.mxu0 %v1120
        %v1134 = vpop.f32.mrf.mxu0
        %v1135 = vadd.f32 %v1116, %v1134
        %v1136 = vpop.f32.mrf.mxu0
        %1137 = vdwg.mxu0
        %1138 = vrot.lane.b32.xlu0 %v953, 112
        %v1139 = vpop.permute.xlu0 %1138
        %1140 = vrot.lane.b32.xlu0 %v953, 80
        %v1141 = vpop.permute.xlu0 %1140
        %v1142 = vsel %vm963, %v1139, 0
        %v1144 = vsel %vm963, %v1141, 0
        %1146 = vmatpush.xpose.msra.mxu0 0.0
        %1147 = vmatpush.xpose.msra.mxu0 0.0
        %1148 = vmatpush.xpose.msra.mxu0 0.0
        %1149 = vmatpush.xpose.msra.mxu0 0.0
        %1150 = vmatpush.xpose.msra.mxu0 0.0
        %1151 = vmatpush.xpose.msra.mxu0 0.0
        %1152 = vmatpush.xpose.msra.mxu0 0.0
        %1153 = vmatpush.xpose.msra.mxu0 0.0
        %1154 = vmatpush.xpose.msra.mxu0 0.0
        %1155 = vmatpush.xpose.msra.mxu0 0.0
        %1156 = vmatpush.xpose.msra.mxu0 0.0
        %1157 = vmatpush.xpose.msra.mxu0 0.0
        %1158 = vmatpush.xpose.msra.mxu0 0.0
        %1159 = vmatpush.xpose.msra.mxu0 0.0
        %1160 = vmatpush.xpose.msra.mxu0 0.0
        %1161 = vmatpush.xpose.msra.mxu0 %v1144
        %1162 = vmatmul.f32.gmra.mxu0 %v1142
        %v1163 = vpop.f32.mrf.mxu0
        %v1164 = vadd.f32 0.0, %v1163
        %1165 = vdwg.mxu0
        %v1166 = vmul.f32 %v1164, 0.35355338
        %v1167 = vadd.f32 %v1166, %v990
        %v1168 = vsel %vm963, %v1167, -inf
        %1169 = vmax.xlane.f32.xlu0 %v1168
        %v1170 = vpop.xlane.xlu0 %1169
        %v1171 = vsub.f32 %v1167, %v1170
        %v1172 = vmul.f32 %v1171, 1.442695
        %v1173 = vpow.pop %v1172
        %v1174 = vsel %vm963, %v1173, 0.0
        %1175 = vadd.xlane.f32.xlu0 %v1174
        %v1176 = vpop.xlane.xlu0 %1175
        %v1177 = vrcp.pop %v1176
        %v1178 = vmul.f32 %v1173, %v1177
        %1179 = vrot.lane.b32.xlu0 %v953, 48
        %v1180 = vpop.permute.xlu0 %1179
        %v1183 = vsel %vm963, %v1178, 0
        %1185 = vmatpush.msra.mxu0 0.0
        %1186 = vmatpush.msra.mxu0 0.0
        %1187 = vmatpush.msra.mxu0 0.0
        %1188 = vmatpush.msra.mxu0 0.0
        %1189 = vmatpush.msra.mxu0 0.0
        %1190 = vmatpush.msra.mxu0 0.0
        %1191 = vmatpush.msra.mxu0 0.0
        %1192 = vmatpush.msra.mxu0 0.0
        %1193 = vmatpush.msra.mxu0 0.0
        %1194 = vmatpush.msra.mxu0 0.0
        %1195 = vmatpush.msra.mxu0 0.0
        %1196 = vmatpush.msra.mxu0 0.0
        %1197 = vmatpush.msra.mxu0 0.0
        %1198 = vmatpush.msra.mxu0 0.0
        %1199 = vmatpush.msra.mxu0 0.0
        %1200 = vmatpush.msra.mxu0 %v1180
        %1201 = vmatmul.f32.gmra.mxu0 %v1183
        %v1202 = vpop.f32.mrf.mxu0
        %v1203 = vadd.f32 0.0, %v1202
        %1204 = vdwg.mxu0
        %v1205 = vpack.c.bf16 %v1203, %v1203
        %v1207 = vsel %vm963, %v1205, 0
        %v1210 = vsel %vm1102, %v958, 0
        %1212 = vmatpush.bf16.msra.mxu0 0
        %1213 = vmatpush.bf16.msra.mxu0 0
        %1214 = vmatpush.bf16.msra.mxu0 0
        %1215 = vmatpush.bf16.msra.mxu0 0
        %1216 = vmatpush.bf16.msra.mxu0 0
        %1217 = vmatpush.bf16.msra.mxu0 0
        %1218 = vmatpush.bf16.msra.mxu0 0
        %1219 = vmatpush.bf16.msra.mxu0 %v1210
        %1220 = vmatmul.bf16.gmra.mxu0 %v1207
        %v1221 = vpop.f32.mrf.mxu0
        %v1222 = vadd.f32 0.0, %v1221
        %v1223 = vpop.f32.mrf.mxu0
        %1224 = vdwg.mxu0
        %v1225 = vadd.f32 %v1135, %v1222
        %1226 = vrot.lane.b32.xlu0 %v953, 104
        %v1227 = vpop.permute.xlu0 %1226
        %1228 = vrot.lane.b32.xlu0 %v953, 72
        %v1229 = vpop.permute.xlu0 %1228
        %v1230 = vsel %vm963, %v1227, 0
        %v1232 = vsel %vm963, %v1229, 0
        %1234 = vmatpush.xpose.msra.mxu0 0.0
        %1235 = vmatpush.xpose.msra.mxu0 0.0
        %1236 = vmatpush.xpose.msra.mxu0 0.0
        %1237 = vmatpush.xpose.msra.mxu0 0.0
        %1238 = vmatpush.xpose.msra.mxu0 0.0
        %1239 = vmatpush.xpose.msra.mxu0 0.0
        %1240 = vmatpush.xpose.msra.mxu0 0.0
        %1241 = vmatpush.xpose.msra.mxu0 0.0
        %1242 = vmatpush.xpose.msra.mxu0 0.0
        %1243 = vmatpush.xpose.msra.mxu0 0.0
        %1244 = vmatpush.xpose.msra.mxu0 0.0
        %1245 = vmatpush.xpose.msra.mxu0 0.0
        %1246 = vmatpush.xpose.msra.mxu0 0.0
        %1247 = vmatpush.xpose.msra.mxu0 0.0
        %1248 = vmatpush.xpose.msra.mxu0 0.0
        %1249 = vmatpush.xpose.msra.mxu0 %v1232
        %1250 = vmatmul.f32.gmra.mxu0 %v1230
        %v1251 = vpop.f32.mrf.mxu0
        %v1252 = vadd.f32 0.0, %v1251
        %1253 = vdwg.mxu0
        %v1254 = vmul.f32 %v1252, 0.35355338
        %v1255 = vadd.f32 %v1254, %v990
        %v1256 = vsel %vm963, %v1255, -inf
        %1257 = vmax.xlane.f32.xlu0 %v1256
        %v1258 = vpop.xlane.xlu0 %1257
        %v1259 = vsub.f32 %v1255, %v1258
        %v1260 = vmul.f32 %v1259, 1.442695
        %v1261 = vpow.pop %v1260
        %v1262 = vsel %vm963, %v1261, 0.0
        %1263 = vadd.xlane.f32.xlu0 %v1262
        %v1264 = vpop.xlane.xlu0 %1263
        %v1265 = vrcp.pop %v1264
        %v1266 = vmul.f32 %v1261, %v1265
        %1267 = vrot.lane.b32.xlu0 %v953, 40
        %v1268 = vpop.permute.xlu0 %1267
        %v1271 = vsel %vm963, %v1266, 0
        %1273 = vmatpush.msra.mxu0 0.0
        %1274 = vmatpush.msra.mxu0 0.0
        %1275 = vmatpush.msra.mxu0 0.0
        %1276 = vmatpush.msra.mxu0 0.0
        %1277 = vmatpush.msra.mxu0 0.0
        %1278 = vmatpush.msra.mxu0 0.0
        %1279 = vmatpush.msra.mxu0 0.0
        %1280 = vmatpush.msra.mxu0 0.0
        %1281 = vmatpush.msra.mxu0 0.0
        %1282 = vmatpush.msra.mxu0 0.0
        %1283 = vmatpush.msra.mxu0 0.0
        %1284 = vmatpush.msra.mxu0 0.0
        %1285 = vmatpush.msra.mxu0 0.0
        %1286 = vmatpush.msra.mxu0 0.0
        %1287 = vmatpush.msra.mxu0 0.0
        %1288 = vmatpush.msra.mxu0 %v1268
        %1289 = vmatmul.f32.gmra.mxu0 %v1271
        %v1290 = vpop.f32.mrf.mxu0
        %v1291 = vadd.f32 0.0, %v1290
        %1292 = vdwg.mxu0
        %v1293 = vpack.c.bf16 %v1291, %v1291
        %v1295 = vsel %vm963, %v1293, 0
        %v1298 = vsel %vm1102, %v959, 0
        %1300 = vmatpush.bf16.msra.mxu0 0
        %1301 = vmatpush.bf16.msra.mxu0 0
        %1302 = vmatpush.bf16.msra.mxu0 0
        %1303 = vmatpush.bf16.msra.mxu0 0
        %1304 = vmatpush.bf16.msra.mxu0 0
        %1305 = vmatpush.bf16.msra.mxu0 0
        %1306 = vmatpush.bf16.msra.mxu0 0
        %1307 = vmatpush.bf16.msra.mxu0 %v1298
        %1308 = vmatmul.bf16.gmra.mxu0 %v1295
        %v1309 = vpop.f32.mrf.mxu0
        %v1310 = vadd.f32 0.0, %v1309
        %v1311 = vpop.f32.mrf.mxu0
        %1312 = vdwg.mxu0
        %v1313 = vadd.f32 %v1225, %v1310
        %v1314 = vadd.f32 %v916, %v1313
        %v1315 = vld [vmem:[%s843] sm:$0x1]
        %v1317 = vperm.slane %v1315, 0
        %v1319 = vadd.f32 %v1314, %v1317
        %v1320 = vld [vmem:[%s846] sm:$0x1]
        %v1321 = vld [vmem:[%s849] sm:$0x1]
        %v1322 = vsel %vm939, %v1319, 0.0
        %1323 = vadd.xlane.f32.xlu0 %v1322
        %v1324 = vpop.xlane.xlu0 %1323
        %v1325 = vrcp.pop 32.0
        %v1326 = vmul.f32 32.0, %v1325
        %v1327 = vsub.f32 1.0, %v1326
        %v1328 = vmul.f32 %v1325, %v1327
        %v1329 = vadd.f32 %v1325, %v1328
        %vm1330 = vweird.f32 %v1325
        %v1331 = vsel %vm1330, %v1325, %v1329
        %v1332 = vmul.f32 %v1324, %v1331
        %v1333 = vsub.f32 %v1319, %v1332
        %v1334 = vmul.f32 %v1333, %v1333
        %v1335 = vsel %vm939, %v1334, 0.0
        %1336 = vadd.xlane.f32.xlu0 %v1335
        %v1337 = vpop.xlane.xlu0 %1336
        %v1338 = vmul.f32 %v1337, %v1331
        %v1339 = vadd.f32 %v1338, 1e-12
        %v1340 = vrsqrt.pop %v1339
        %v1341 = vmul.f32 %v1340, %v1339
        %v1342 = vmul.f32 %v1341, %v1340
        %v1343 = vmul.f32 0.5, %v1342
        %v1344 = vsub.f32 1.5, %v1343
        %v1345 = vmul.f32 %v1340, %v1344
        %vm1346 = vweird.f32 %v1339
        %vm1347 = vweird.f32 %v1340
        %vm1348 = vmor %vm1346, %vm1347
        %v1349 = vsel %vm1348, %v1340, %v1345
        %v1350 = vmul.f32 %v1333, %v1349
        %v1352 = vperm.slane %v1320, 0
        %v1354 = vmul.f32 %v1350, %v1352
        %v1356 = vperm.slane %v1321, 0
        %v1358 = vadd.f32 %v1354, %v1356
        %v1359 = vld [vmem:[%s854] sm:$0xf]
        %v1360 = vld [vmem:[%s854 + $0x4] sm:$0xf]
        %v1361 = vld [vmem:[%s854 + $0x8] sm:$0xf]
        %v1362 = vld [vmem:[%s854 + $0xc] sm:$0xf]
        %v1363 = vpack.c.bf16 %v1358, %v1358
        %v1364 = vld [vmem:[%s857] sm:$0x1]
        %v1366 = vperm.slane %v1364, 0
        %v1372 = vunpack.c.l.b16 %v1359
        %v1373 = vunpack.c.l.b16 %v1360
        %v1374 = vunpack.c.l.b16 %v1361
        %v1375 = vunpack.c.l.b16 %v1362
        %v1376 = vpack.c.b16 %v1373, %v1372
        %v1377 = vpack.c.b16 %v1375, %v1374
        %v1381 = vsel %vm939, %v1363, 0
        %1383 = vmatpush.bf16.msra.mxu0 0
        %1384 = vmatpush.bf16.msra.mxu0 0
        %1385 = vmatpush.bf16.msra.mxu0 0
        %1386 = vmatpush.bf16.msra.mxu0 0
        %1387 = vmatpush.bf16.msra.mxu0 0
        %1388 = vmatpush.bf16.msra.mxu0 0
        %1389 = vmatpush.bf16.msra.mxu0 %v1377
        %1390 = vmatpush.bf16.msra.mxu0 %v1376
        %1391 = vmatmul.bf16.gmra.mxu0 %v1381
        %v1392 = vpop.f32.mrf.mxu0
        %v1393 = vadd.f32 %v1366, %v1392
        %v1394 = vpop.f32.mrf.mxu0
        %1395 = vdwg.mxu0
        %v1396 = vmul.f32 %v1393, 0.5
        %v1397 = vmul.f32 %v1393, 0.044715
        %v1398 = vmul.f32 %v1397, %v1393
        %v1399 = vmul.f32 %v1398, %v1393
        %v1400 = vadd.f32 %v1393, %v1399
        %v1401 = vmul.f32 %v1400, 0.7978846
        %v1402 = vtanh.pop %v1401
        %v1403 = vadd.f32 %v1402, 1.0
        %v1404 = vmul.f32 %v1396, %v1403
        %v1405 = vld [vmem:[%s862] sm:$0xf]
        %v1406 = vld [vmem:[%s862 + $0x4] sm:$0xf]
        %v1407 = vld [vmem:[%s862 + $0x8] sm:$0xf]
        %v1408 = vld [vmem:[%s862 + $0xc] sm:$0xf]
        %v1409 = vld [vmem:[%s862 + $0x10] sm:$0xf]
        %v1410 = vld [vmem:[%s862 + $0x14] sm:$0xf]
        %v1411 = vld [vmem:[%s862 + $0x18] sm:$0xf]
        %v1412 = vld [vmem:[%s862 + $0x1c] sm:$0xf]
        %v1413 = vpack.c.bf16 %v1404, %v1404
        %v1414 = vld [vmem:[%s865] sm:$0x1]
        %v1416 = vperm.slane %v1414, 0
        %v1426 = vunpack.c.l.b16 %v1405
        %v1427 = vunpack.c.l.b16 %v1406
        %v1428 = vunpack.c.l.b16 %v1407
        %v1429 = vunpack.c.l.b16 %v1408
        %v1430 = vunpack.c.l.b16 %v1409
        %v1431 = vunpack.c.l.b16 %v1410
        %v1432 = vunpack.c.l.b16 %v1411
        %v1433 = vunpack.c.l.b16 %v1412
        %v1434 = vpack.c.b16 %v1427, %v1426
        %v1435 = vpack.c.b16 %v1429, %v1428
        %v1436 = vpack.c.b16 %v1431, %v1430
        %v1437 = vpack.c.b16 %v1433, %v1432
        %vm1442 = vcmask 523264
        %v1444 = vsel %vm1442, %v1413, 0
        %1446 = vmatpush.bf16.msra.mxu0 0
        %1447 = vmatpush.bf16.msra.mxu0 0
        %1448 = vmatpush.bf16.msra.mxu0 0
        %1449 = vmatpush.bf16.msra.mxu0 0
        %1450 = vmatpush.bf16.msra.mxu0 %v1437
        %1451 = vmatpush.bf16.msra.mxu0 %v1436
        %1452 = vmatpush.bf16.msra.mxu0 %v1435
        %1453 = vmatpush.bf16.msra.mxu0 %v1434
        %1454 = vmatmul.bf16.gmra.mxu0 %v1444
        %v1455 = vpop.f32.mrf.mxu0
        %v1456 = vadd.f32 %v1416, %v1455
        %v1457 = vpop.f32.mrf.mxu0
        %1458 = vdwg.mxu0
        %v1459 = vadd.f32 %v1358, %v1456
        %v1460 = vld [vmem:[%s724] sm:$0x1]
        %v1461 = vld [vmem:[%s868] sm:$0x1]
        %v1462 = vsel %vm939, %v1459, 0.0
        %1463 = vadd.xlane.f32.xlu0 %v1462
        %v1464 = vpop.xlane.xlu0 %1463
        %v1465 = vmul.f32 %v1464, %v1331
        %v1466 = vsub.f32 %v1459, %v1465
        %v1467 = vmul.f32 %v1466, %v1466
        %v1468 = vsel %vm939, %v1467, 0.0
        %1469 = vadd.xlane.f32.xlu0 %v1468
        %v1470 = vpop.xlane.xlu0 %1469
        %v1471 = vmul.f32 %v1470, %v1331
        %v1472 = vadd.f32 %v1471, 1e-12
        %v1473 = vrsqrt.pop %v1472
        %v1474 = vmul.f32 %v1473, %v1472
        %v1475 = vmul.f32 %v1474, %v1473
        %v1476 = vmul.f32 0.5, %v1475
        %v1477 = vsub.f32 1.5, %v1476
        %v1478 = vmul.f32 %v1473, %v1477
        %vm1479 = vweird.f32 %v1472
        %vm1480 = vweird.f32 %v1473
        %vm1481 = vmor %vm1479, %vm1480
        %v1482 = vsel %vm1481, %v1473, %v1478
        %v1483 = vmul.f32 %v1466, %v1482
        %v1485 = vperm.slane %v1460, 0
        %v1487 = vmul.f32 %v1483, %v1485
        %v1489 = vperm.slane %v1461, 0
        %v1491 = vadd.f32 %v1487, %v1489
        %1492 = vst.msk [vmem:[#allocation2] sm:$0xff] %vm939, %v1491
        %p1493 = scmp.eq.s32.totalorder %s43, 1
        // Predicated region
        $region113: #{tpu_custom_call.1} parent=87 // pred_check
          %p1494 = pneg %p1493
        $region114: #{tpu_custom_call.1} parent=87 // pred_check_branch
          %1496 = sbr.rel (%p1494) target = $region116
        $region115: #{tpu_custom_call.1} parent=87 // pred_region
          %v1497 = vld [vmem:[%s710] sm:$0x1]
          %v1499 = vsel %vm963, %v1497, 0
          %1501 = vmatpush.msra.mxu0 0.0
          %1502 = vmatpush.msra.mxu0 0.0
          %1503 = vmatpush.msra.mxu0 0.0
          %1504 = vmatpush.msra.mxu0 0.0
          %1505 = vmatpush.msra.mxu0 0.0
          %1506 = vmatpush.msra.mxu0 0.0
          %1507 = vmatpush.msra.mxu0 0.0
          %1508 = vmatpush.msra.mxu0 0.0
          %1509 = vmatpush.msra.mxu0 0.0
          %1510 = vmatpush.msra.mxu0 0.0
          %1511 = vmatpush.msra.mxu0 0.0
          %1512 = vmatpush.msra.mxu0 0.0
          %1513 = vmatpush.msra.mxu0 0.0
          %1514 = vmatpush.msra.mxu0 0.0
          %1515 = vmatpush.msra.mxu0 0.0
          %1516 = vmatpush.msra.mxu0 %v1491
          %1517 = vmatmul.f32.gmra.mxu0 %v1499
          %v1518 = vpop.f32.mrf.mxu0
          %v1519 = vadd.f32 0.0, %v1518
          %1520 = vdwg.mxu0
          %vm1521 = vcmask 253952
          %1522 = vst.msk [vmem:[%s827] sm:$0x1] %vm1521, %v1519
        $region116: #{tpu_custom_call.1} parent=87 // pred_fallthru
          _
        %s1523 = sand.u32 %s490, 1
        %s1524 = scalar_lea.sflag [#allocation5], %s1523
        %s1525 = sand.u32 %s490, 1
        %s1526 = scalar_lea.vmem [#allocation12], %s1525
        // Predicated region
        $region117: #{tpu_custom_call.1} parent=87 // pred_check
          %p1527 = pneg %p500
        $region118: #{tpu_custom_call.1} parent=87 // pred_check_branch
          %1529 = sbr.rel (%p1527) target = $region120
        $region119: #{tpu_custom_call.1} parent=87 // pred_region
          %1531 = vsyncadd %s1524, 0
          %s1532 = scalar_lea.hbm %s17, %s42
          %s1534 = sshll.u32 %s1526, 4
          %s1535 = int_to_ptr.vmem [resolvable:$true] %s1534
          %s1536 = sshll.u32 %s1532, 4
          %s1537 = int_to_ptr.hbm [resolvable:$true] %s1536
          %1539 = dma.vmem_to_hbm [thread:$0]  %s1535, 16, %s1537, %s1524
        $region120: #{tpu_custom_call.1} parent=87 // pred_fallthru
          _
      $region88: #{tpu_custom_call.1} parent=5 // pred_fallthru
        _
      %p1540 = scmp.le.s32.totalorder 2, %s33
      // Predicated region
      $region121: #{tpu_custom_call.1} parent=5 // pred_check
        %p1541 = pneg %p1540
      $region122: #{tpu_custom_call.1} parent=5 // pred_check_branch
        %1543 = sbr.rel (%p1541) target = $region124
      $region123: #{tpu_custom_call.1} parent=5 // pred_region
        %s1544 = ssub.s32 %s33, 2
        // Predicated region
        $region125: #{tpu_custom_call.1} parent=123 // pred_check
          %p1545 = pneg %p506
        $region126: #{tpu_custom_call.1} parent=123 // pred_check_branch
          %1547 = sbr.rel (%p1545) target = $region128
        $region127: #{tpu_custom_call.1} parent=123 // pred_region
          %s1548 = sand.u32 %s491, 1
          %s1549 = scalar_lea.sflag [#allocation5], %s1548
          %s1550 = sand.u32 %s491, 1
          %s1551 = scalar_lea.vmem [#allocation12], %s1550
          %1553 = dma.done %s1549, 16
        $region128: #{tpu_custom_call.1} parent=123 // pred_fallthru
          _
      $region124: #{tpu_custom_call.1} parent=5 // pred_fallthru
        _
    $region6: #{tpu_custom_call.1} parent=1 // loop_footer
      %s37 = sadd.s32 1, %s33
    $region7: #{tpu_custom_call.1} parent=1 // loop_footer_branch
      %32 = sbr.rel target = $region3
    $region8: #{tpu_custom_call.1} parent=1 // loop_exit
      _
    %1554 = vsyncpa [#allocation4], 1
    %s1555 = scalar_lea.sflag [#allocation4], 1
    %1556 = vsyncpa %s1555, 1
    %1557 = vsyncpa [#allocation7], 1
    %s1558 = scalar_lea.sflag [#allocation7], 1
    %1559 = vsyncpa %s1558, 1
    %1560 = vsyncpa [#allocation10], 1
    %1561 = vsyncpa [#allocation5], 1
    %s1562 = scalar_lea.sflag [#allocation5], 1
    %1563 = vsyncpa %s1562, 1

</llo_original>
